<compile_context>
chip_gen: v5e
topology: v5e:2x2
jax: 0.10.0
libtpu: 0.0.40
codegen_flags: <defaults>
</compile_context>

<pallas_src>
import math
import jax
import jax.numpy as jnp
from jax.experimental import pallas as pl
from jax.experimental.pallas import tpu as pltpu


# ----------------------------- Pallas kernel ------------------------------ #
def _make_dense_kernel(channel, unit_num, tile_rows):
    """Fused dense-connection kernel for one (C, tile_rows, 128) pixel tile.

    Kernel args:
      x_ref : (C, TR, 128) input tile (channel, sublane-rows, lanes)
      w_ref : (n_scalars,) flat f32 weights/biases in SMEM
      o_ref : (C, TR, 128) output tile
    """
    C = channel

    def kernel(x_ref, w_ref, o_ref):
        def lrelu(v):
            # mul + max (2 VPU ops); identical to where(v>=0, v, 0.2v) for
            # finite inputs.
            return jnp.maximum(v, 0.2 * v)

        def process(r0, nrows):
            # Per-channel (nrows, 128) pixel slabs.
            x = [x_ref[c, pl.ds(r0, nrows), :] for c in range(C)]
            cat = [x]          # list (per source) of lists (per channel)
            out = x
            idx = 0            # static cursor into the flat weight vector
            for i in range(unit_num):
                # ---- unit: 1x1 conv (C -> C) + LeakyReLU  (VPU scalar FMA)
                tmp = []
                for c in range(C):
                    acc = w_ref[idx + c * C] * out[0]
                    for k in range(1, C):
                        acc = acc + w_ref[idx + c * C + k] * out[k]
                    tmp.append(lrelu(acc + w_ref[idx + C * C + c]))
                idx += C * C + C
                cat.append(tmp)

                # ---- conv1x1 over the concat: ((i+2)*C -> C) + LeakyReLU.
                # concat+matmul is expressed directly as a sum over all
                # (source j, channel k) scalar FMAs -> no concatenate, no MXU.
                n_src = i + 2
                new_out = []
                for c in range(C):
                    base = idx + c * n_src * C
                    acc = w_ref[base] * cat[0][0]
                    for j in range(n_src):
                        for k in range(C):
                            if j == 0 and k == 0:
                                continue
                            acc = acc + w_ref[base + j * C + k] * cat[j][k]
                    new_out.append(lrelu(acc + w_ref[idx + n_src * C * C + c]))
                idx += n_src * C * C + C
                out = new_out

            for c in range(C):
                o_ref[c, pl.ds(r0, nrows), :] = out[c].astype(o_ref.dtype)

        # Chunk the tile into 8-row (8x128 = one f32 vreg per channel) pieces
        # so the live 'cat' slabs stay well under the 64-vreg file even for
        # large DMA tiles.
        full, rem = divmod(tile_rows, 8)
        if full == 1:
            process(0, 8)
        elif full > 1:
            @pl.loop(0, full)
            def _(ch):
                process(pl.multiple_of(ch * 8, 8), 8)
        if rem > 0:
            process(full * 8, rem)

    return kernel


def _choose_tile_rows(N, R, max_tile_rows=64):
    """Pick the row-tile size (second-to-last block dim).

    Must be a multiple of 8 or equal to the full extent R.  Prefer the
    largest multiple-of-8 divisor of R that still leaves enough grid steps
    (>=2 for v7x megacore, ideally >=8 for pipelining overlap).
    """
    cands = [d for d in range(8, min(R, max_tile_rows) + 1, 8) if R % d == 0]
    if not cands:
        return R                       # full-extent block (small / ragged R)
    target = max(2, min(8, N * R))
    for d in sorted(cands, reverse=True):
        if N * (R // d) >= target:
            return d
    return cands[0]                    # smallest -> maximum number of steps


# ----------------------- Parameter init (deterministic) -------------------- #
def _init_conv1x1_params(key, c_in, c_out):
    """Mimic PyTorch Conv2d default init; weight stored as (Cout, Cin)."""
    k = 1.0 / math.sqrt(c_in)  # fan_in of a 1x1 conv = c_in
    kw, kb = jax.random.split(key)
    w = jax.random.uniform(kw, (c_out, c_in), jnp.float32, minval=-k, maxval=k)
    b = jax.random.uniform(kb, (c_out,), jnp.float32, minval=-k, maxval=k)
    return w, b


class DenseConnectionPallas:
    """JAX/Pallas port of DenseConnection.

    units[i]   : 1x1 conv (C -> C)        + LeakyReLU(0.2)   (stand-in unit)
    conv1x1[i] : 1x1 conv ((i+2)*C -> C)  + LeakyReLU(0.2)
    """

    def __init__(self, unit_num, channel, key):
        self.unit_num = unit_num
        self.channel = channel
        self.unit_params = []
        self.conv_params = []
        keys = jax.random.split(key, max(1, 2 * unit_num))
        for i in range(unit_num):
            self.unit_params.append(
                _init_conv1x1_params(keys[2 * i], channel, channel))
            self.conv_params.append(
                _init_conv1x1_params(keys[2 * i + 1], (i + 2) * channel, channel))

    # Pack all weights/biases into one flat f32 vector (SMEM-resident).
    # Layout per layer i: uw(C*C) row-major, ub(C), cw(C*(i+2)*C) row-major,
    # cb(C) — must match the kernel's static index walk.
    def _packed_weights(self):
        parts = []
        for i in range(self.unit_num):
            uw, ub = self.unit_params[i]
            cw, cb = self.conv_params[i]
            parts += [uw.reshape(-1), ub.reshape(-1),
                      cw.reshape(-1), cb.reshape(-1)]
        if not parts:
            parts = [jnp.zeros((1,), jnp.float32)]
        return jnp.concatenate(parts).astype(jnp.float32)

    def __call__(self, x_nchw):
        N, C, H, W = x_nchw.shape
        assert C == self.channel
        HW = H * W

        # NCHW -> (N, C, R, 128): pure reshape, no transpose.  Pad the pixel
        # axis only up to the next multiple of 128, and only if needed.
        R = -(-HW // 128)
        hw_pad = R * 128
        x3 = x_nchw.reshape(N, C, HW)
        if hw_pad != HW:
            x3 = jnp.pad(x3, ((0, 0), (0, 0), (0, hw_pad - HW)))
        x4 = x3.reshape(N, C, R, 128)

        tile_rows = _choose_tile_rows(N, R)
        grid = (N, R // tile_rows)

        w_flat = self._packed_weights()
        kernel = _make_dense_kernel(C, self.unit_num, tile_rows)

        out = pl.pallas_call(
            kernel,
            out_shape=jax.ShapeDtypeStruct((N, C, R, 128), jnp.float32),
            grid_spec=pltpu.PrefetchScalarGridSpec(
                num_scalar_prefetch=0,
                grid=grid,
                in_specs=[
                    pl.BlockSpec((None, C, tile_rows, 128),
                                 lambda n, p: (n, 0, p, 0)),
                    # all weights/biases as one flat scalar vector in SMEM
                    pl.BlockSpec(memory_space=pltpu.MemorySpace.SMEM),
                ],
                out_specs=pl.BlockSpec((None, C, tile_rows, 128),
                                       lambda n, p: (n, 0, p, 0)),
            ),
            compiler_params=pltpu.CompilerParams(
                dimension_semantics=("parallel", "parallel"),
            ),
        )(x4, w_flat)

        out = out.reshape(N, C, hw_pad)
        if hw_pad != HW:
            out = out[:, :, :HW]          # only when padding actually happened
        return out.reshape(N, C, H, W)

    # Pure-JAX reference (mirrors the PyTorch module exactly: concat + conv).
    def reference(self, x_nchw):
        def pw(x, w, b):
            y = jnp.einsum('oc,nchw->nohw', w, x) + b[None, :, None, None]
            return jnp.where(y >= 0, y, 0.2 * y)

        cat = [x_nchw]
        out = x_nchw
        for i in range(self.unit_num):
            uw, ub = self.unit_params[i]
            tmp = pw(out, uw, ub)
            cat.append(tmp)
            cw, cb = self.conv_params[i]
            out = pw(jnp.concatenate(cat, axis=1), cw, cb)
        return out


if __name__ == "__main__":
    key = jax.random.PRNGKey(0)
    k_param, k_input = jax.random.split(key)

    # small shapes: batch=2, channels=4, spatial=16x16, unit_num=3
    N, C, H, W = 2, 4, 16, 16
    unit_num = 3

    model = DenseConnectionPallas(unit_num=unit_num, channel=C, key=k_param)
    x = jax.random.normal(k_input, (N, C, H, W), dtype=jnp.float32)

    out = jax.block_until_ready(model(x))
    ref = jax.block_until_ready(model.reference(x))

    assert out.shape == (N, C, H, W)
    assert jnp.max(jnp.abs(out - ref)) < 1e-4

    print("KERNEL_OK")
</pallas_src>

<mosaic_0001>
module attributes {stable_mosaic.version = 11 : i64} {
  func.func @kernel(%arg0: i32, %arg1: i32, %arg2: memref<1x4x2x128xf32, #tpu.memory_space<vmem>>, %arg3: memref<216xf32, #tpu.memory_space<smem>>, %arg4: memref<1x4x2x128xf32, #tpu.memory_space<vmem>>) attributes {dimension_semantics = [#tpu.dimension_semantics<parallel>, #tpu.dimension_semantics<parallel>], iteration_bounds = array<i64: 2, 1>, scalar_prefetch = 0 : i64, scratch_operands = 0 : i64, tpu.core_type = #tpu.core_type<tc>, window_params = [{transform_indices = @transform_0, window_bounds = array<i64: 1, 4, 2, 128>}, {transform_indices = @transform_1, window_bounds = array<i64: 216>}, {transform_indices = @transform_2, window_bounds = array<i64: 1, 4, 2, 128>}]} {
    %c0 = arith.constant 0 : index
    %c0_0 = arith.constant 0 : index
    %c0_1 = arith.constant 0 : index
    %c0_2 = arith.constant 0 : index
    %0 = vector.load %arg2[%c0, %c0_0, %c0_1, %c0_2] : memref<1x4x2x128xf32, #tpu.memory_space<vmem>>, vector<1x1x2x128xf32>
    %1 = vector.shape_cast %0 : vector<1x1x2x128xf32> to vector<2x128xf32>
    %c0_3 = arith.constant 0 : index
    %c1 = arith.constant 1 : index
    %c0_4 = arith.constant 0 : index
    %c0_5 = arith.constant 0 : index
    %2 = vector.load %arg2[%c0_3, %c1, %c0_4, %c0_5] : memref<1x4x2x128xf32, #tpu.memory_space<vmem>>, vector<1x1x2x128xf32>
    %3 = vector.shape_cast %2 : vector<1x1x2x128xf32> to vector<2x128xf32>
    %c0_6 = arith.constant 0 : index
    %c2 = arith.constant 2 : index
    %c0_7 = arith.constant 0 : index
    %c0_8 = arith.constant 0 : index
    %4 = vector.load %arg2[%c0_6, %c2, %c0_7, %c0_8] : memref<1x4x2x128xf32, #tpu.memory_space<vmem>>, vector<1x1x2x128xf32>
    %5 = vector.shape_cast %4 : vector<1x1x2x128xf32> to vector<2x128xf32>
    %c0_9 = arith.constant 0 : index
    %c3 = arith.constant 3 : index
    %c0_10 = arith.constant 0 : index
    %c0_11 = arith.constant 0 : index
    %6 = vector.load %arg2[%c0_9, %c3, %c0_10, %c0_11] : memref<1x4x2x128xf32, #tpu.memory_space<vmem>>, vector<1x1x2x128xf32>
    %7 = vector.shape_cast %6 : vector<1x1x2x128xf32> to vector<2x128xf32>
    %c0_12 = arith.constant 0 : index
    %8 = memref.load %arg3[%c0_12] : memref<216xf32, #tpu.memory_space<smem>>
    %9 = vector.broadcast %8 : f32 to vector<2x128xf32>
    %10 = arith.mulf %9, %1 : vector<2x128xf32>
    %c1_13 = arith.constant 1 : index
    %11 = memref.load %arg3[%c1_13] : memref<216xf32, #tpu.memory_space<smem>>
    %12 = vector.broadcast %11 : f32 to vector<2x128xf32>
    %13 = arith.mulf %12, %3 : vector<2x128xf32>
    %14 = arith.addf %10, %13 : vector<2x128xf32>
    %c2_14 = arith.constant 2 : index
    %15 = memref.load %arg3[%c2_14] : memref<216xf32, #tpu.memory_space<smem>>
    %16 = vector.broadcast %15 : f32 to vector<2x128xf32>
    %17 = arith.mulf %16, %5 : vector<2x128xf32>
    %18 = arith.addf %14, %17 : vector<2x128xf32>
    %c3_15 = arith.constant 3 : index
    %19 = memref.load %arg3[%c3_15] : memref<216xf32, #tpu.memory_space<smem>>
    %20 = vector.broadcast %19 : f32 to vector<2x128xf32>
    %21 = arith.mulf %20, %7 : vector<2x128xf32>
    %22 = arith.addf %18, %21 : vector<2x128xf32>
    %c16 = arith.constant 16 : index
    %23 = memref.load %arg3[%c16] : memref<216xf32, #tpu.memory_space<smem>>
    %24 = vector.broadcast %23 : f32 to vector<2x128xf32>
    %25 = arith.addf %22, %24 : vector<2x128xf32>
    %cst = arith.constant 2.000000e-01 : f32
    %26 = vector.broadcast %cst : f32 to vector<2x128xf32>
    %27 = arith.mulf %26, %25 : vector<2x128xf32>
    %28 = arith.maximumf %25, %27 : vector<2x128xf32>
    %c4 = arith.constant 4 : index
    %29 = memref.load %arg3[%c4] : memref<216xf32, #tpu.memory_space<smem>>
    %30 = vector.broadcast %29 : f32 to vector<2x128xf32>
    %31 = arith.mulf %30, %1 : vector<2x128xf32>
    %c5 = arith.constant 5 : index
    %32 = memref.load %arg3[%c5] : memref<216xf32, #tpu.memory_space<smem>>
    %33 = vector.broadcast %32 : f32 to vector<2x128xf32>
    %34 = arith.mulf %33, %3 : vector<2x128xf32>
    %35 = arith.addf %31, %34 : vector<2x128xf32>
    %c6 = arith.constant 6 : index
    %36 = memref.load %arg3[%c6] : memref<216xf32, #tpu.memory_space<smem>>
    %37 = vector.broadcast %36 : f32 to vector<2x128xf32>
    %38 = arith.mulf %37, %5 : vector<2x128xf32>
    %39 = arith.addf %35, %38 : vector<2x128xf32>
    %c7 = arith.constant 7 : index
    %40 = memref.load %arg3[%c7] : memref<216xf32, #tpu.memory_space<smem>>
    %41 = vector.broadcast %40 : f32 to vector<2x128xf32>
    %42 = arith.mulf %41, %7 : vector<2x128xf32>
    %43 = arith.addf %39, %42 : vector<2x128xf32>
    %c17 = arith.constant 17 : index
    %44 = memref.load %arg3[%c17] : memref<216xf32, #tpu.memory_space<smem>>
    %45 = vector.broadcast %44 : f32 to vector<2x128xf32>
    %46 = arith.addf %43, %45 : vector<2x128xf32>
    %cst_16 = arith.constant 2.000000e-01 : f32
    %47 = vector.broadcast %cst_16 : f32 to vector<2x128xf32>
    %48 = arith.mulf %47, %46 : vector<2x128xf32>
    %49 = arith.maximumf %46, %48 : vector<2x128xf32>
    %c8 = arith.constant 8 : index
    %50 = memref.load %arg3[%c8] : memref<216xf32, #tpu.memory_space<smem>>
    %51 = vector.broadcast %50 : f32 to vector<2x128xf32>
    %52 = arith.mulf %51, %1 : vector<2x128xf32>
    %c9 = arith.constant 9 : index
    %53 = memref.load %arg3[%c9] : memref<216xf32, #tpu.memory_space<smem>>
    %54 = vector.broadcast %53 : f32 to vector<2x128xf32>
    %55 = arith.mulf %54, %3 : vector<2x128xf32>
    %56 = arith.addf %52, %55 : vector<2x128xf32>
    %c10 = arith.constant 10 : index
    %57 = memref.load %arg3[%c10] : memref<216xf32, #tpu.memory_space<smem>>
    %58 = vector.broadcast %57 : f32 to vector<2x128xf32>
    %59 = arith.mulf %58, %5 : vector<2x128xf32>
    %60 = arith.addf %56, %59 : vector<2x128xf32>
    %c11 = arith.constant 11 : index
    %61 = memref.load %arg3[%c11] : memref<216xf32, #tpu.memory_space<smem>>
    %62 = vector.broadcast %61 : f32 to vector<2x128xf32>
    %63 = arith.mulf %62, %7 : vector<2x128xf32>
    %64 = arith.addf %60, %63 : vector<2x128xf32>
    %c18 = arith.constant 18 : index
    %65 = memref.load %arg3[%c18] : memref<216xf32, #tpu.memory_space<smem>>
    %66 = vector.broadcast %65 : f32 to vector<2x128xf32>
    %67 = arith.addf %64, %66 : vector<2x128xf32>
    %cst_17 = arith.constant 2.000000e-01 : f32
    %68 = vector.broadcast %cst_17 : f32 to vector<2x128xf32>
    %69 = arith.mulf %68, %67 : vector<2x128xf32>
    %70 = arith.maximumf %67, %69 : vector<2x128xf32>
    %c12 = arith.constant 12 : index
    %71 = memref.load %arg3[%c12] : memref<216xf32, #tpu.memory_space<smem>>
    %72 = vector.broadcast %71 : f32 to vector<2x128xf32>
    %73 = arith.mulf %72, %1 : vector<2x128xf32>
    %c13 = arith.constant 13 : index
    %74 = memref.load %arg3[%c13] : memref<216xf32, #tpu.memory_space<smem>>
    %75 = vector.broadcast %74 : f32 to vector<2x128xf32>
    %76 = arith.mulf %75, %3 : vector<2x128xf32>
    %77 = arith.addf %73, %76 : vector<2x128xf32>
    %c14 = arith.constant 14 : index
    %78 = memref.load %arg3[%c14] : memref<216xf32, #tpu.memory_space<smem>>
    %79 = vector.broadcast %78 : f32 to vector<2x128xf32>
    %80 = arith.mulf %79, %5 : vector<2x128xf32>
    %81 = arith.addf %77, %80 : vector<2x128xf32>
    %c15 = arith.constant 15 : index
    %82 = memref.load %arg3[%c15] : memref<216xf32, #tpu.memory_space<smem>>
    %83 = vector.broadcast %82 : f32 to vector<2x128xf32>
    %84 = arith.mulf %83, %7 : vector<2x128xf32>
    %85 = arith.addf %81, %84 : vector<2x128xf32>
    %c19 = arith.constant 19 : index
    %86 = memref.load %arg3[%c19] : memref<216xf32, #tpu.memory_space<smem>>
    %87 = vector.broadcast %86 : f32 to vector<2x128xf32>
    %88 = arith.addf %85, %87 : vector<2x128xf32>
    %cst_18 = arith.constant 2.000000e-01 : f32
    %89 = vector.broadcast %cst_18 : f32 to vector<2x128xf32>
    %90 = arith.mulf %89, %88 : vector<2x128xf32>
    %91 = arith.maximumf %88, %90 : vector<2x128xf32>
    %c20 = arith.constant 20 : index
    %92 = memref.load %arg3[%c20] : memref<216xf32, #tpu.memory_space<smem>>
    %93 = vector.broadcast %92 : f32 to vector<2x128xf32>
    %94 = arith.mulf %93, %1 : vector<2x128xf32>
    %c21 = arith.constant 21 : index
    %95 = memref.load %arg3[%c21] : memref<216xf32, #tpu.memory_space<smem>>
    %96 = vector.broadcast %95 : f32 to vector<2x128xf32>
    %97 = arith.mulf %96, %3 : vector<2x128xf32>
    %98 = arith.addf %94, %97 : vector<2x128xf32>
    %c22 = arith.constant 22 : index
    %99 = memref.load %arg3[%c22] : memref<216xf32, #tpu.memory_space<smem>>
    %100 = vector.broadcast %99 : f32 to vector<2x128xf32>
    %101 = arith.mulf %100, %5 : vector<2x128xf32>
    %102 = arith.addf %98, %101 : vector<2x128xf32>
    %c23 = arith.constant 23 : index
    %103 = memref.load %arg3[%c23] : memref<216xf32, #tpu.memory_space<smem>>
    %104 = vector.broadcast %103 : f32 to vector<2x128xf32>
    %105 = arith.mulf %104, %7 : vector<2x128xf32>
    %106 = arith.addf %102, %105 : vector<2x128xf32>
    %c24 = arith.constant 24 : index
    %107 = memref.load %arg3[%c24] : memref<216xf32, #tpu.memory_space<smem>>
    %108 = vector.broadcast %107 : f32 to vector<2x128xf32>
    %109 = arith.mulf %108, %28 : vector<2x128xf32>
    %110 = arith.addf %106, %109 : vector<2x128xf32>
    %c25 = arith.constant 25 : index
    %111 = memref.load %arg3[%c25] : memref<216xf32, #tpu.memory_space<smem>>
    %112 = vector.broadcast %111 : f32 to vector<2x128xf32>
    %113 = arith.mulf %112, %49 : vector<2x128xf32>
    %114 = arith.addf %110, %113 : vector<2x128xf32>
    %c26 = arith.constant 26 : index
    %115 = memref.load %arg3[%c26] : memref<216xf32, #tpu.memory_space<smem>>
    %116 = vector.broadcast %115 : f32 to vector<2x128xf32>
    %117 = arith.mulf %116, %70 : vector<2x128xf32>
    %118 = arith.addf %114, %117 : vector<2x128xf32>
    %c27 = arith.constant 27 : index
    %119 = memref.load %arg3[%c27] : memref<216xf32, #tpu.memory_space<smem>>
    %120 = vector.broadcast %119 : f32 to vector<2x128xf32>
    %121 = arith.mulf %120, %91 : vector<2x128xf32>
    %122 = arith.addf %118, %121 : vector<2x128xf32>
    %c52 = arith.constant 52 : index
    %123 = memref.load %arg3[%c52] : memref<216xf32, #tpu.memory_space<smem>>
    %124 = vector.broadcast %123 : f32 to vector<2x128xf32>
    %125 = arith.addf %122, %124 : vector<2x128xf32>
    %cst_19 = arith.constant 2.000000e-01 : f32
    %126 = vector.broadcast %cst_19 : f32 to vector<2x128xf32>
    %127 = arith.mulf %126, %125 : vector<2x128xf32>
    %128 = arith.maximumf %125, %127 : vector<2x128xf32>
    %c28 = arith.constant 28 : index
    %129 = memref.load %arg3[%c28] : memref<216xf32, #tpu.memory_space<smem>>
    %130 = vector.broadcast %129 : f32 to vector<2x128xf32>
    %131 = arith.mulf %130, %1 : vector<2x128xf32>
    %c29 = arith.constant 29 : index
    %132 = memref.load %arg3[%c29] : memref<216xf32, #tpu.memory_space<smem>>
    %133 = vector.broadcast %132 : f32 to vector<2x128xf32>
    %134 = arith.mulf %133, %3 : vector<2x128xf32>
    %135 = arith.addf %131, %134 : vector<2x128xf32>
    %c30 = arith.constant 30 : index
    %136 = memref.load %arg3[%c30] : memref<216xf32, #tpu.memory_space<smem>>
    %137 = vector.broadcast %136 : f32 to vector<2x128xf32>
    %138 = arith.mulf %137, %5 : vector<2x128xf32>
    %139 = arith.addf %135, %138 : vector<2x128xf32>
    %c31 = arith.constant 31 : index
    %140 = memref.load %arg3[%c31] : memref<216xf32, #tpu.memory_space<smem>>
    %141 = vector.broadcast %140 : f32 to vector<2x128xf32>
    %142 = arith.mulf %141, %7 : vector<2x128xf32>
    %143 = arith.addf %139, %142 : vector<2x128xf32>
    %c32 = arith.constant 32 : index
    %144 = memref.load %arg3[%c32] : memref<216xf32, #tpu.memory_space<smem>>
    %145 = vector.broadcast %144 : f32 to vector<2x128xf32>
    %146 = arith.mulf %145, %28 : vector<2x128xf32>
    %147 = arith.addf %143, %146 : vector<2x128xf32>
    %c33 = arith.constant 33 : index
    %148 = memref.load %arg3[%c33] : memref<216xf32, #tpu.memory_space<smem>>
    %149 = vector.broadcast %148 : f32 to vector<2x128xf32>
    %150 = arith.mulf %149, %49 : vector<2x128xf32>
    %151 = arith.addf %147, %150 : vector<2x128xf32>
    %c34 = arith.constant 34 : index
    %152 = memref.load %arg3[%c34] : memref<216xf32, #tpu.memory_space<smem>>
    %153 = vector.broadcast %152 : f32 to vector<2x128xf32>
    %154 = arith.mulf %153, %70 : vector<2x128xf32>
    %155 = arith.addf %151, %154 : vector<2x128xf32>
    %c35 = arith.constant 35 : index
    %156 = memref.load %arg3[%c35] : memref<216xf32, #tpu.memory_space<smem>>
    %157 = vector.broadcast %156 : f32 to vector<2x128xf32>
    %158 = arith.mulf %157, %91 : vector<2x128xf32>
    %159 = arith.addf %155, %158 : vector<2x128xf32>
    %c53 = arith.constant 53 : index
    %160 = memref.load %arg3[%c53] : memref<216xf32, #tpu.memory_space<smem>>
    %161 = vector.broadcast %160 : f32 to vector<2x128xf32>
    %162 = arith.addf %159, %161 : vector<2x128xf32>
    %cst_20 = arith.constant 2.000000e-01 : f32
    %163 = vector.broadcast %cst_20 : f32 to vector<2x128xf32>
    %164 = arith.mulf %163, %162 : vector<2x128xf32>
    %165 = arith.maximumf %162, %164 : vector<2x128xf32>
    %c36 = arith.constant 36 : index
    %166 = memref.load %arg3[%c36] : memref<216xf32, #tpu.memory_space<smem>>
    %167 = vector.broadcast %166 : f32 to vector<2x128xf32>
    %168 = arith.mulf %167, %1 : vector<2x128xf32>
    %c37 = arith.constant 37 : index
    %169 = memref.load %arg3[%c37] : memref<216xf32, #tpu.memory_space<smem>>
    %170 = vector.broadcast %169 : f32 to vector<2x128xf32>
    %171 = arith.mulf %170, %3 : vector<2x128xf32>
    %172 = arith.addf %168, %171 : vector<2x128xf32>
    %c38 = arith.constant 38 : index
    %173 = memref.load %arg3[%c38] : memref<216xf32, #tpu.memory_space<smem>>
    %174 = vector.broadcast %173 : f32 to vector<2x128xf32>
    %175 = arith.mulf %174, %5 : vector<2x128xf32>
    %176 = arith.addf %172, %175 : vector<2x128xf32>
    %c39 = arith.constant 39 : index
    %177 = memref.load %arg3[%c39] : memref<216xf32, #tpu.memory_space<smem>>
    %178 = vector.broadcast %177 : f32 to vector<2x128xf32>
    %179 = arith.mulf %178, %7 : vector<2x128xf32>
    %180 = arith.addf %176, %179 : vector<2x128xf32>
    %c40 = arith.constant 40 : index
    %181 = memref.load %arg3[%c40] : memref<216xf32, #tpu.memory_space<smem>>
    %182 = vector.broadcast %181 : f32 to vector<2x128xf32>
    %183 = arith.mulf %182, %28 : vector<2x128xf32>
    %184 = arith.addf %180, %183 : vector<2x128xf32>
    %c41 = arith.constant 41 : index
    %185 = memref.load %arg3[%c41] : memref<216xf32, #tpu.memory_space<smem>>
    %186 = vector.broadcast %185 : f32 to vector<2x128xf32>
    %187 = arith.mulf %186, %49 : vector<2x128xf32>
    %188 = arith.addf %184, %187 : vector<2x128xf32>
    %c42 = arith.constant 42 : index
    %189 = memref.load %arg3[%c42] : memref<216xf32, #tpu.memory_space<smem>>
    %190 = vector.broadcast %189 : f32 to vector<2x128xf32>
    %191 = arith.mulf %190, %70 : vector<2x128xf32>
    %192 = arith.addf %188, %191 : vector<2x128xf32>
    %c43 = arith.constant 43 : index
    %193 = memref.load %arg3[%c43] : memref<216xf32, #tpu.memory_space<smem>>
    %194 = vector.broadcast %193 : f32 to vector<2x128xf32>
    %195 = arith.mulf %194, %91 : vector<2x128xf32>
    %196 = arith.addf %192, %195 : vector<2x128xf32>
    %c54 = arith.constant 54 : index
    %197 = memref.load %arg3[%c54] : memref<216xf32, #tpu.memory_space<smem>>
    %198 = vector.broadcast %197 : f32 to vector<2x128xf32>
    %199 = arith.addf %196, %198 : vector<2x128xf32>
    %cst_21 = arith.constant 2.000000e-01 : f32
    %200 = vector.broadcast %cst_21 : f32 to vector<2x128xf32>
    %201 = arith.mulf %200, %199 : vector<2x128xf32>
    %202 = arith.maximumf %199, %201 : vector<2x128xf32>
    %c44 = arith.constant 44 : index
    %203 = memref.load %arg3[%c44] : memref<216xf32, #tpu.memory_space<smem>>
    %204 = vector.broadcast %203 : f32 to vector<2x128xf32>
    %205 = arith.mulf %204, %1 : vector<2x128xf32>
    %c45 = arith.constant 45 : index
    %206 = memref.load %arg3[%c45] : memref<216xf32, #tpu.memory_space<smem>>
    %207 = vector.broadcast %206 : f32 to vector<2x128xf32>
    %208 = arith.mulf %207, %3 : vector<2x128xf32>
    %209 = arith.addf %205, %208 : vector<2x128xf32>
    %c46 = arith.constant 46 : index
    %210 = memref.load %arg3[%c46] : memref<216xf32, #tpu.memory_space<smem>>
    %211 = vector.broadcast %210 : f32 to vector<2x128xf32>
    %212 = arith.mulf %211, %5 : vector<2x128xf32>
    %213 = arith.addf %209, %212 : vector<2x128xf32>
    %c47 = arith.constant 47 : index
    %214 = memref.load %arg3[%c47] : memref<216xf32, #tpu.memory_space<smem>>
    %215 = vector.broadcast %214 : f32 to vector<2x128xf32>
    %216 = arith.mulf %215, %7 : vector<2x128xf32>
    %217 = arith.addf %213, %216 : vector<2x128xf32>
    %c48 = arith.constant 48 : index
    %218 = memref.load %arg3[%c48] : memref<216xf32, #tpu.memory_space<smem>>
    %219 = vector.broadcast %218 : f32 to vector<2x128xf32>
    %220 = arith.mulf %219, %28 : vector<2x128xf32>
    %221 = arith.addf %217, %220 : vector<2x128xf32>
    %c49 = arith.constant 49 : index
    %222 = memref.load %arg3[%c49] : memref<216xf32, #tpu.memory_space<smem>>
    %223 = vector.broadcast %222 : f32 to vector<2x128xf32>
    %224 = arith.mulf %223, %49 : vector<2x128xf32>
    %225 = arith.addf %221, %224 : vector<2x128xf32>
    %c50 = arith.constant 50 : index
    %226 = memref.load %arg3[%c50] : memref<216xf32, #tpu.memory_space<smem>>
    %227 = vector.broadcast %226 : f32 to vector<2x128xf32>
    %228 = arith.mulf %227, %70 : vector<2x128xf32>
    %229 = arith.addf %225, %228 : vector<2x128xf32>
    %c51 = arith.constant 51 : index
    %230 = memref.load %arg3[%c51] : memref<216xf32, #tpu.memory_space<smem>>
    %231 = vector.broadcast %230 : f32 to vector<2x128xf32>
    %232 = arith.mulf %231, %91 : vector<2x128xf32>
    %233 = arith.addf %229, %232 : vector<2x128xf32>
    %c55 = arith.constant 55 : index
    %234 = memref.load %arg3[%c55] : memref<216xf32, #tpu.memory_space<smem>>
    %235 = vector.broadcast %234 : f32 to vector<2x128xf32>
    %236 = arith.addf %233, %235 : vector<2x128xf32>
    %cst_22 = arith.constant 2.000000e-01 : f32
    %237 = vector.broadcast %cst_22 : f32 to vector<2x128xf32>
    %238 = arith.mulf %237, %236 : vector<2x128xf32>
    %239 = arith.maximumf %236, %238 : vector<2x128xf32>
    %c56 = arith.constant 56 : index
    %240 = memref.load %arg3[%c56] : memref<216xf32, #tpu.memory_space<smem>>
    %241 = vector.broadcast %240 : f32 to vector<2x128xf32>
    %242 = arith.mulf %241, %128 : vector<2x128xf32>
    %c57 = arith.constant 57 : index
    %243 = memref.load %arg3[%c57] : memref<216xf32, #tpu.memory_space<smem>>
    %244 = vector.broadcast %243 : f32 to vector<2x128xf32>
    %245 = arith.mulf %244, %165 : vector<2x128xf32>
    %246 = arith.addf %242, %245 : vector<2x128xf32>
    %c58 = arith.constant 58 : index
    %247 = memref.load %arg3[%c58] : memref<216xf32, #tpu.memory_space<smem>>
    %248 = vector.broadcast %247 : f32 to vector<2x128xf32>
    %249 = arith.mulf %248, %202 : vector<2x128xf32>
    %250 = arith.addf %246, %249 : vector<2x128xf32>
    %c59 = arith.constant 59 : index
    %251 = memref.load %arg3[%c59] : memref<216xf32, #tpu.memory_space<smem>>
    %252 = vector.broadcast %251 : f32 to vector<2x128xf32>
    %253 = arith.mulf %252, %239 : vector<2x128xf32>
    %254 = arith.addf %250, %253 : vector<2x128xf32>
    %c72 = arith.constant 72 : index
    %255 = memref.load %arg3[%c72] : memref<216xf32, #tpu.memory_space<smem>>
    %256 = vector.broadcast %255 : f32 to vector<2x128xf32>
    %257 = arith.addf %254, %256 : vector<2x128xf32>
    %cst_23 = arith.constant 2.000000e-01 : f32
    %258 = vector.broadcast %cst_23 : f32 to vector<2x128xf32>
    %259 = arith.mulf %258, %257 : vector<2x128xf32>
    %260 = arith.maximumf %257, %259 : vector<2x128xf32>
    %c60 = arith.constant 60 : index
    %261 = memref.load %arg3[%c60] : memref<216xf32, #tpu.memory_space<smem>>
    %262 = vector.broadcast %261 : f32 to vector<2x128xf32>
    %263 = arith.mulf %262, %128 : vector<2x128xf32>
    %c61 = arith.constant 61 : index
    %264 = memref.load %arg3[%c61] : memref<216xf32, #tpu.memory_space<smem>>
    %265 = vector.broadcast %264 : f32 to vector<2x128xf32>
    %266 = arith.mulf %265, %165 : vector<2x128xf32>
    %267 = arith.addf %263, %266 : vector<2x128xf32>
    %c62 = arith.constant 62 : index
    %268 = memref.load %arg3[%c62] : memref<216xf32, #tpu.memory_space<smem>>
    %269 = vector.broadcast %268 : f32 to vector<2x128xf32>
    %270 = arith.mulf %269, %202 : vector<2x128xf32>
    %271 = arith.addf %267, %270 : vector<2x128xf32>
    %c63 = arith.constant 63 : index
    %272 = memref.load %arg3[%c63] : memref<216xf32, #tpu.memory_space<smem>>
    %273 = vector.broadcast %272 : f32 to vector<2x128xf32>
    %274 = arith.mulf %273, %239 : vector<2x128xf32>
    %275 = arith.addf %271, %274 : vector<2x128xf32>
    %c73 = arith.constant 73 : index
    %276 = memref.load %arg3[%c73] : memref<216xf32, #tpu.memory_space<smem>>
    %277 = vector.broadcast %276 : f32 to vector<2x128xf32>
    %278 = arith.addf %275, %277 : vector<2x128xf32>
    %cst_24 = arith.constant 2.000000e-01 : f32
    %279 = vector.broadcast %cst_24 : f32 to vector<2x128xf32>
    %280 = arith.mulf %279, %278 : vector<2x128xf32>
    %281 = arith.maximumf %278, %280 : vector<2x128xf32>
    %c64 = arith.constant 64 : index
    %282 = memref.load %arg3[%c64] : memref<216xf32, #tpu.memory_space<smem>>
    %283 = vector.broadcast %282 : f32 to vector<2x128xf32>
    %284 = arith.mulf %283, %128 : vector<2x128xf32>
    %c65 = arith.constant 65 : index
    %285 = memref.load %arg3[%c65] : memref<216xf32, #tpu.memory_space<smem>>
    %286 = vector.broadcast %285 : f32 to vector<2x128xf32>
    %287 = arith.mulf %286, %165 : vector<2x128xf32>
    %288 = arith.addf %284, %287 : vector<2x128xf32>
    %c66 = arith.constant 66 : index
    %289 = memref.load %arg3[%c66] : memref<216xf32, #tpu.memory_space<smem>>
    %290 = vector.broadcast %289 : f32 to vector<2x128xf32>
    %291 = arith.mulf %290, %202 : vector<2x128xf32>
    %292 = arith.addf %288, %291 : vector<2x128xf32>
    %c67 = arith.constant 67 : index
    %293 = memref.load %arg3[%c67] : memref<216xf32, #tpu.memory_space<smem>>
    %294 = vector.broadcast %293 : f32 to vector<2x128xf32>
    %295 = arith.mulf %294, %239 : vector<2x128xf32>
    %296 = arith.addf %292, %295 : vector<2x128xf32>
    %c74 = arith.constant 74 : index
    %297 = memref.load %arg3[%c74] : memref<216xf32, #tpu.memory_space<smem>>
    %298 = vector.broadcast %297 : f32 to vector<2x128xf32>
    %299 = arith.addf %296, %298 : vector<2x128xf32>
    %cst_25 = arith.constant 2.000000e-01 : f32
    %300 = vector.broadcast %cst_25 : f32 to vector<2x128xf32>
    %301 = arith.mulf %300, %299 : vector<2x128xf32>
    %302 = arith.maximumf %299, %301 : vector<2x128xf32>
    %c68 = arith.constant 68 : index
    %303 = memref.load %arg3[%c68] : memref<216xf32, #tpu.memory_space<smem>>
    %304 = vector.broadcast %303 : f32 to vector<2x128xf32>
    %305 = arith.mulf %304, %128 : vector<2x128xf32>
    %c69 = arith.constant 69 : index
    %306 = memref.load %arg3[%c69] : memref<216xf32, #tpu.memory_space<smem>>
    %307 = vector.broadcast %306 : f32 to vector<2x128xf32>
    %308 = arith.mulf %307, %165 : vector<2x128xf32>
    %309 = arith.addf %305, %308 : vector<2x128xf32>
    %c70 = arith.constant 70 : index
    %310 = memref.load %arg3[%c70] : memref<216xf32, #tpu.memory_space<smem>>
    %311 = vector.broadcast %310 : f32 to vector<2x128xf32>
    %312 = arith.mulf %311, %202 : vector<2x128xf32>
    %313 = arith.addf %309, %312 : vector<2x128xf32>
    %c71 = arith.constant 71 : index
    %314 = memref.load %arg3[%c71] : memref<216xf32, #tpu.memory_space<smem>>
    %315 = vector.broadcast %314 : f32 to vector<2x128xf32>
    %316 = arith.mulf %315, %239 : vector<2x128xf32>
    %317 = arith.addf %313, %316 : vector<2x128xf32>
    %c75 = arith.constant 75 : index
    %318 = memref.load %arg3[%c75] : memref<216xf32, #tpu.memory_space<smem>>
    %319 = vector.broadcast %318 : f32 to vector<2x128xf32>
    %320 = arith.addf %317, %319 : vector<2x128xf32>
    %cst_26 = arith.constant 2.000000e-01 : f32
    %321 = vector.broadcast %cst_26 : f32 to vector<2x128xf32>
    %322 = arith.mulf %321, %320 : vector<2x128xf32>
    %323 = arith.maximumf %320, %322 : vector<2x128xf32>
    %c76 = arith.constant 76 : index
    %324 = memref.load %arg3[%c76] : memref<216xf32, #tpu.memory_space<smem>>
    %325 = vector.broadcast %324 : f32 to vector<2x128xf32>
    %326 = arith.mulf %325, %1 : vector<2x128xf32>
    %c77 = arith.constant 77 : index
    %327 = memref.load %arg3[%c77] : memref<216xf32, #tpu.memory_space<smem>>
    %328 = vector.broadcast %327 : f32 to vector<2x128xf32>
    %329 = arith.mulf %328, %3 : vector<2x128xf32>
    %330 = arith.addf %326, %329 : vector<2x128xf32>
    %c78 = arith.constant 78 : index
    %331 = memref.load %arg3[%c78] : memref<216xf32, #tpu.memory_space<smem>>
    %332 = vector.broadcast %331 : f32 to vector<2x128xf32>
    %333 = arith.mulf %332, %5 : vector<2x128xf32>
    %334 = arith.addf %330, %333 : vector<2x128xf32>
    %c79 = arith.constant 79 : index
    %335 = memref.load %arg3[%c79] : memref<216xf32, #tpu.memory_space<smem>>
    %336 = vector.broadcast %335 : f32 to vector<2x128xf32>
    %337 = arith.mulf %336, %7 : vector<2x128xf32>
    %338 = arith.addf %334, %337 : vector<2x128xf32>
    %c80 = arith.constant 80 : index
    %339 = memref.load %arg3[%c80] : memref<216xf32, #tpu.memory_space<smem>>
    %340 = vector.broadcast %339 : f32 to vector<2x128xf32>
    %341 = arith.mulf %340, %28 : vector<2x128xf32>
    %342 = arith.addf %338, %341 : vector<2x128xf32>
    %c81 = arith.constant 81 : index
    %343 = memref.load %arg3[%c81] : memref<216xf32, #tpu.memory_space<smem>>
    %344 = vector.broadcast %343 : f32 to vector<2x128xf32>
    %345 = arith.mulf %344, %49 : vector<2x128xf32>
    %346 = arith.addf %342, %345 : vector<2x128xf32>
    %c82 = arith.constant 82 : index
    %347 = memref.load %arg3[%c82] : memref<216xf32, #tpu.memory_space<smem>>
    %348 = vector.broadcast %347 : f32 to vector<2x128xf32>
    %349 = arith.mulf %348, %70 : vector<2x128xf32>
    %350 = arith.addf %346, %349 : vector<2x128xf32>
    %c83 = arith.constant 83 : index
    %351 = memref.load %arg3[%c83] : memref<216xf32, #tpu.memory_space<smem>>
    %352 = vector.broadcast %351 : f32 to vector<2x128xf32>
    %353 = arith.mulf %352, %91 : vector<2x128xf32>
    %354 = arith.addf %350, %353 : vector<2x128xf32>
    %c84 = arith.constant 84 : index
    %355 = memref.load %arg3[%c84] : memref<216xf32, #tpu.memory_space<smem>>
    %356 = vector.broadcast %355 : f32 to vector<2x128xf32>
    %357 = arith.mulf %356, %260 : vector<2x128xf32>
    %358 = arith.addf %354, %357 : vector<2x128xf32>
    %c85 = arith.constant 85 : index
    %359 = memref.load %arg3[%c85] : memref<216xf32, #tpu.memory_space<smem>>
    %360 = vector.broadcast %359 : f32 to vector<2x128xf32>
    %361 = arith.mulf %360, %281 : vector<2x128xf32>
    %362 = arith.addf %358, %361 : vector<2x128xf32>
    %c86 = arith.constant 86 : index
    %363 = memref.load %arg3[%c86] : memref<216xf32, #tpu.memory_space<smem>>
    %364 = vector.broadcast %363 : f32 to vector<2x128xf32>
    %365 = arith.mulf %364, %302 : vector<2x128xf32>
    %366 = arith.addf %362, %365 : vector<2x128xf32>
    %c87 = arith.constant 87 : index
    %367 = memref.load %arg3[%c87] : memref<216xf32, #tpu.memory_space<smem>>
    %368 = vector.broadcast %367 : f32 to vector<2x128xf32>
    %369 = arith.mulf %368, %323 : vector<2x128xf32>
    %370 = arith.addf %366, %369 : vector<2x128xf32>
    %c124 = arith.constant 124 : index
    %371 = memref.load %arg3[%c124] : memref<216xf32, #tpu.memory_space<smem>>
    %372 = vector.broadcast %371 : f32 to vector<2x128xf32>
    %373 = arith.addf %370, %372 : vector<2x128xf32>
    %cst_27 = arith.constant 2.000000e-01 : f32
    %374 = vector.broadcast %cst_27 : f32 to vector<2x128xf32>
    %375 = arith.mulf %374, %373 : vector<2x128xf32>
    %376 = arith.maximumf %373, %375 : vector<2x128xf32>
    %c88 = arith.constant 88 : index
    %377 = memref.load %arg3[%c88] : memref<216xf32, #tpu.memory_space<smem>>
    %378 = vector.broadcast %377 : f32 to vector<2x128xf32>
    %379 = arith.mulf %378, %1 : vector<2x128xf32>
    %c89 = arith.constant 89 : index
    %380 = memref.load %arg3[%c89] : memref<216xf32, #tpu.memory_space<smem>>
    %381 = vector.broadcast %380 : f32 to vector<2x128xf32>
    %382 = arith.mulf %381, %3 : vector<2x128xf32>
    %383 = arith.addf %379, %382 : vector<2x128xf32>
    %c90 = arith.constant 90 : index
    %384 = memref.load %arg3[%c90] : memref<216xf32, #tpu.memory_space<smem>>
    %385 = vector.broadcast %384 : f32 to vector<2x128xf32>
    %386 = arith.mulf %385, %5 : vector<2x128xf32>
    %387 = arith.addf %383, %386 : vector<2x128xf32>
    %c91 = arith.constant 91 : index
    %388 = memref.load %arg3[%c91] : memref<216xf32, #tpu.memory_space<smem>>
    %389 = vector.broadcast %388 : f32 to vector<2x128xf32>
    %390 = arith.mulf %389, %7 : vector<2x128xf32>
    %391 = arith.addf %387, %390 : vector<2x128xf32>
    %c92 = arith.constant 92 : index
    %392 = memref.load %arg3[%c92] : memref<216xf32, #tpu.memory_space<smem>>
    %393 = vector.broadcast %392 : f32 to vector<2x128xf32>
    %394 = arith.mulf %393, %28 : vector<2x128xf32>
    %395 = arith.addf %391, %394 : vector<2x128xf32>
    %c93 = arith.constant 93 : index
    %396 = memref.load %arg3[%c93] : memref<216xf32, #tpu.memory_space<smem>>
    %397 = vector.broadcast %396 : f32 to vector<2x128xf32>
    %398 = arith.mulf %397, %49 : vector<2x128xf32>
    %399 = arith.addf %395, %398 : vector<2x128xf32>
    %c94 = arith.constant 94 : index
    %400 = memref.load %arg3[%c94] : memref<216xf32, #tpu.memory_space<smem>>
    %401 = vector.broadcast %400 : f32 to vector<2x128xf32>
    %402 = arith.mulf %401, %70 : vector<2x128xf32>
    %403 = arith.addf %399, %402 : vector<2x128xf32>
    %c95 = arith.constant 95 : index
    %404 = memref.load %arg3[%c95] : memref<216xf32, #tpu.memory_space<smem>>
    %405 = vector.broadcast %404 : f32 to vector<2x128xf32>
    %406 = arith.mulf %405, %91 : vector<2x128xf32>
    %407 = arith.addf %403, %406 : vector<2x128xf32>
    %c96 = arith.constant 96 : index
    %408 = memref.load %arg3[%c96] : memref<216xf32, #tpu.memory_space<smem>>
    %409 = vector.broadcast %408 : f32 to vector<2x128xf32>
    %410 = arith.mulf %409, %260 : vector<2x128xf32>
    %411 = arith.addf %407, %410 : vector<2x128xf32>
    %c97 = arith.constant 97 : index
    %412 = memref.load %arg3[%c97] : memref<216xf32, #tpu.memory_space<smem>>
    %413 = vector.broadcast %412 : f32 to vector<2x128xf32>
    %414 = arith.mulf %413, %281 : vector<2x128xf32>
    %415 = arith.addf %411, %414 : vector<2x128xf32>
    %c98 = arith.constant 98 : index
    %416 = memref.load %arg3[%c98] : memref<216xf32, #tpu.memory_space<smem>>
    %417 = vector.broadcast %416 : f32 to vector<2x128xf32>
    %418 = arith.mulf %417, %302 : vector<2x128xf32>
    %419 = arith.addf %415, %418 : vector<2x128xf32>
    %c99 = arith.constant 99 : index
    %420 = memref.load %arg3[%c99] : memref<216xf32, #tpu.memory_space<smem>>
    %421 = vector.broadcast %420 : f32 to vector<2x128xf32>
    %422 = arith.mulf %421, %323 : vector<2x128xf32>
    %423 = arith.addf %419, %422 : vector<2x128xf32>
    %c125 = arith.constant 125 : index
    %424 = memref.load %arg3[%c125] : memref<216xf32, #tpu.memory_space<smem>>
    %425 = vector.broadcast %424 : f32 to vector<2x128xf32>
    %426 = arith.addf %423, %425 : vector<2x128xf32>
    %cst_28 = arith.constant 2.000000e-01 : f32
    %427 = vector.broadcast %cst_28 : f32 to vector<2x128xf32>
    %428 = arith.mulf %427, %426 : vector<2x128xf32>
    %429 = arith.maximumf %426, %428 : vector<2x128xf32>
    %c100 = arith.constant 100 : index
    %430 = memref.load %arg3[%c100] : memref<216xf32, #tpu.memory_space<smem>>
    %431 = vector.broadcast %430 : f32 to vector<2x128xf32>
    %432 = arith.mulf %431, %1 : vector<2x128xf32>
    %c101 = arith.constant 101 : index
    %433 = memref.load %arg3[%c101] : memref<216xf32, #tpu.memory_space<smem>>
    %434 = vector.broadcast %433 : f32 to vector<2x128xf32>
    %435 = arith.mulf %434, %3 : vector<2x128xf32>
    %436 = arith.addf %432, %435 : vector<2x128xf32>
    %c102 = arith.constant 102 : index
    %437 = memref.load %arg3[%c102] : memref<216xf32, #tpu.memory_space<smem>>
    %438 = vector.broadcast %437 : f32 to vector<2x128xf32>
    %439 = arith.mulf %438, %5 : vector<2x128xf32>
    %440 = arith.addf %436, %439 : vector<2x128xf32>
    %c103 = arith.constant 103 : index
    %441 = memref.load %arg3[%c103] : memref<216xf32, #tpu.memory_space<smem>>
    %442 = vector.broadcast %441 : f32 to vector<2x128xf32>
    %443 = arith.mulf %442, %7 : vector<2x128xf32>
    %444 = arith.addf %440, %443 : vector<2x128xf32>
    %c104 = arith.constant 104 : index
    %445 = memref.load %arg3[%c104] : memref<216xf32, #tpu.memory_space<smem>>
    %446 = vector.broadcast %445 : f32 to vector<2x128xf32>
    %447 = arith.mulf %446, %28 : vector<2x128xf32>
    %448 = arith.addf %444, %447 : vector<2x128xf32>
    %c105 = arith.constant 105 : index
    %449 = memref.load %arg3[%c105] : memref<216xf32, #tpu.memory_space<smem>>
    %450 = vector.broadcast %449 : f32 to vector<2x128xf32>
    %451 = arith.mulf %450, %49 : vector<2x128xf32>
    %452 = arith.addf %448, %451 : vector<2x128xf32>
    %c106 = arith.constant 106 : index
    %453 = memref.load %arg3[%c106] : memref<216xf32, #tpu.memory_space<smem>>
    %454 = vector.broadcast %453 : f32 to vector<2x128xf32>
    %455 = arith.mulf %454, %70 : vector<2x128xf32>
    %456 = arith.addf %452, %455 : vector<2x128xf32>
    %c107 = arith.constant 107 : index
    %457 = memref.load %arg3[%c107] : memref<216xf32, #tpu.memory_space<smem>>
    %458 = vector.broadcast %457 : f32 to vector<2x128xf32>
    %459 = arith.mulf %458, %91 : vector<2x128xf32>
    %460 = arith.addf %456, %459 : vector<2x128xf32>
    %c108 = arith.constant 108 : index
    %461 = memref.load %arg3[%c108] : memref<216xf32, #tpu.memory_space<smem>>
    %462 = vector.broadcast %461 : f32 to vector<2x128xf32>
    %463 = arith.mulf %462, %260 : vector<2x128xf32>
    %464 = arith.addf %460, %463 : vector<2x128xf32>
    %c109 = arith.constant 109 : index
    %465 = memref.load %arg3[%c109] : memref<216xf32, #tpu.memory_space<smem>>
    %466 = vector.broadcast %465 : f32 to vector<2x128xf32>
    %467 = arith.mulf %466, %281 : vector<2x128xf32>
    %468 = arith.addf %464, %467 : vector<2x128xf32>
    %c110 = arith.constant 110 : index
    %469 = memref.load %arg3[%c110] : memref<216xf32, #tpu.memory_space<smem>>
    %470 = vector.broadcast %469 : f32 to vector<2x128xf32>
    %471 = arith.mulf %470, %302 : vector<2x128xf32>
    %472 = arith.addf %468, %471 : vector<2x128xf32>
    %c111 = arith.constant 111 : index
    %473 = memref.load %arg3[%c111] : memref<216xf32, #tpu.memory_space<smem>>
    %474 = vector.broadcast %473 : f32 to vector<2x128xf32>
    %475 = arith.mulf %474, %323 : vector<2x128xf32>
    %476 = arith.addf %472, %475 : vector<2x128xf32>
    %c126 = arith.constant 126 : index
    %477 = memref.load %arg3[%c126] : memref<216xf32, #tpu.memory_space<smem>>
    %478 = vector.broadcast %477 : f32 to vector<2x128xf32>
    %479 = arith.addf %476, %478 : vector<2x128xf32>
    %cst_29 = arith.constant 2.000000e-01 : f32
    %480 = vector.broadcast %cst_29 : f32 to vector<2x128xf32>
    %481 = arith.mulf %480, %479 : vector<2x128xf32>
    %482 = arith.maximumf %479, %481 : vector<2x128xf32>
    %c112 = arith.constant 112 : index
    %483 = memref.load %arg3[%c112] : memref<216xf32, #tpu.memory_space<smem>>
    %484 = vector.broadcast %483 : f32 to vector<2x128xf32>
    %485 = arith.mulf %484, %1 : vector<2x128xf32>
    %c113 = arith.constant 113 : index
    %486 = memref.load %arg3[%c113] : memref<216xf32, #tpu.memory_space<smem>>
    %487 = vector.broadcast %486 : f32 to vector<2x128xf32>
    %488 = arith.mulf %487, %3 : vector<2x128xf32>
    %489 = arith.addf %485, %488 : vector<2x128xf32>
    %c114 = arith.constant 114 : index
    %490 = memref.load %arg3[%c114] : memref<216xf32, #tpu.memory_space<smem>>
    %491 = vector.broadcast %490 : f32 to vector<2x128xf32>
    %492 = arith.mulf %491, %5 : vector<2x128xf32>
    %493 = arith.addf %489, %492 : vector<2x128xf32>
    %c115 = arith.constant 115 : index
    %494 = memref.load %arg3[%c115] : memref<216xf32, #tpu.memory_space<smem>>
    %495 = vector.broadcast %494 : f32 to vector<2x128xf32>
    %496 = arith.mulf %495, %7 : vector<2x128xf32>
    %497 = arith.addf %493, %496 : vector<2x128xf32>
    %c116 = arith.constant 116 : index
    %498 = memref.load %arg3[%c116] : memref<216xf32, #tpu.memory_space<smem>>
    %499 = vector.broadcast %498 : f32 to vector<2x128xf32>
    %500 = arith.mulf %499, %28 : vector<2x128xf32>
    %501 = arith.addf %497, %500 : vector<2x128xf32>
    %c117 = arith.constant 117 : index
    %502 = memref.load %arg3[%c117] : memref<216xf32, #tpu.memory_space<smem>>
    %503 = vector.broadcast %502 : f32 to vector<2x128xf32>
    %504 = arith.mulf %503, %49 : vector<2x128xf32>
    %505 = arith.addf %501, %504 : vector<2x128xf32>
    %c118 = arith.constant 118 : index
    %506 = memref.load %arg3[%c118] : memref<216xf32, #tpu.memory_space<smem>>
    %507 = vector.broadcast %506 : f32 to vector<2x128xf32>
    %508 = arith.mulf %507, %70 : vector<2x128xf32>
    %509 = arith.addf %505, %508 : vector<2x128xf32>
    %c119 = arith.constant 119 : index
    %510 = memref.load %arg3[%c119] : memref<216xf32, #tpu.memory_space<smem>>
    %511 = vector.broadcast %510 : f32 to vector<2x128xf32>
    %512 = arith.mulf %511, %91 : vector<2x128xf32>
    %513 = arith.addf %509, %512 : vector<2x128xf32>
    %c120 = arith.constant 120 : index
    %514 = memref.load %arg3[%c120] : memref<216xf32, #tpu.memory_space<smem>>
    %515 = vector.broadcast %514 : f32 to vector<2x128xf32>
    %516 = arith.mulf %515, %260 : vector<2x128xf32>
    %517 = arith.addf %513, %516 : vector<2x128xf32>
    %c121 = arith.constant 121 : index
    %518 = memref.load %arg3[%c121] : memref<216xf32, #tpu.memory_space<smem>>
    %519 = vector.broadcast %518 : f32 to vector<2x128xf32>
    %520 = arith.mulf %519, %281 : vector<2x128xf32>
    %521 = arith.addf %517, %520 : vector<2x128xf32>
    %c122 = arith.constant 122 : index
    %522 = memref.load %arg3[%c122] : memref<216xf32, #tpu.memory_space<smem>>
    %523 = vector.broadcast %522 : f32 to vector<2x128xf32>
    %524 = arith.mulf %523, %302 : vector<2x128xf32>
    %525 = arith.addf %521, %524 : vector<2x128xf32>
    %c123 = arith.constant 123 : index
    %526 = memref.load %arg3[%c123] : memref<216xf32, #tpu.memory_space<smem>>
    %527 = vector.broadcast %526 : f32 to vector<2x128xf32>
    %528 = arith.mulf %527, %323 : vector<2x128xf32>
    %529 = arith.addf %525, %528 : vector<2x128xf32>
    %c127 = arith.constant 127 : index
    %530 = memref.load %arg3[%c127] : memref<216xf32, #tpu.memory_space<smem>>
    %531 = vector.broadcast %530 : f32 to vector<2x128xf32>
    %532 = arith.addf %529, %531 : vector<2x128xf32>
    %cst_30 = arith.constant 2.000000e-01 : f32
    %533 = vector.broadcast %cst_30 : f32 to vector<2x128xf32>
    %534 = arith.mulf %533, %532 : vector<2x128xf32>
    %535 = arith.maximumf %532, %534 : vector<2x128xf32>
    %c128 = arith.constant 128 : index
    %536 = memref.load %arg3[%c128] : memref<216xf32, #tpu.memory_space<smem>>
    %537 = vector.broadcast %536 : f32 to vector<2x128xf32>
    %538 = arith.mulf %537, %376 : vector<2x128xf32>
    %c129 = arith.constant 129 : index
    %539 = memref.load %arg3[%c129] : memref<216xf32, #tpu.memory_space<smem>>
    %540 = vector.broadcast %539 : f32 to vector<2x128xf32>
    %541 = arith.mulf %540, %429 : vector<2x128xf32>
    %542 = arith.addf %538, %541 : vector<2x128xf32>
    %c130 = arith.constant 130 : index
    %543 = memref.load %arg3[%c130] : memref<216xf32, #tpu.memory_space<smem>>
    %544 = vector.broadcast %543 : f32 to vector<2x128xf32>
    %545 = arith.mulf %544, %482 : vector<2x128xf32>
    %546 = arith.addf %542, %545 : vector<2x128xf32>
    %c131 = arith.constant 131 : index
    %547 = memref.load %arg3[%c131] : memref<216xf32, #tpu.memory_space<smem>>
    %548 = vector.broadcast %547 : f32 to vector<2x128xf32>
    %549 = arith.mulf %548, %535 : vector<2x128xf32>
    %550 = arith.addf %546, %549 : vector<2x128xf32>
    %c144 = arith.constant 144 : index
    %551 = memref.load %arg3[%c144] : memref<216xf32, #tpu.memory_space<smem>>
    %552 = vector.broadcast %551 : f32 to vector<2x128xf32>
    %553 = arith.addf %550, %552 : vector<2x128xf32>
    %cst_31 = arith.constant 2.000000e-01 : f32
    %554 = vector.broadcast %cst_31 : f32 to vector<2x128xf32>
    %555 = arith.mulf %554, %553 : vector<2x128xf32>
    %556 = arith.maximumf %553, %555 : vector<2x128xf32>
    %c132 = arith.constant 132 : index
    %557 = memref.load %arg3[%c132] : memref<216xf32, #tpu.memory_space<smem>>
    %558 = vector.broadcast %557 : f32 to vector<2x128xf32>
    %559 = arith.mulf %558, %376 : vector<2x128xf32>
    %c133 = arith.constant 133 : index
    %560 = memref.load %arg3[%c133] : memref<216xf32, #tpu.memory_space<smem>>
    %561 = vector.broadcast %560 : f32 to vector<2x128xf32>
    %562 = arith.mulf %561, %429 : vector<2x128xf32>
    %563 = arith.addf %559, %562 : vector<2x128xf32>
    %c134 = arith.constant 134 : index
    %564 = memref.load %arg3[%c134] : memref<216xf32, #tpu.memory_space<smem>>
    %565 = vector.broadcast %564 : f32 to vector<2x128xf32>
    %566 = arith.mulf %565, %482 : vector<2x128xf32>
    %567 = arith.addf %563, %566 : vector<2x128xf32>
    %c135 = arith.constant 135 : index
    %568 = memref.load %arg3[%c135] : memref<216xf32, #tpu.memory_space<smem>>
    %569 = vector.broadcast %568 : f32 to vector<2x128xf32>
    %570 = arith.mulf %569, %535 : vector<2x128xf32>
    %571 = arith.addf %567, %570 : vector<2x128xf32>
    %c145 = arith.constant 145 : index
    %572 = memref.load %arg3[%c145] : memref<216xf32, #tpu.memory_space<smem>>
    %573 = vector.broadcast %572 : f32 to vector<2x128xf32>
    %574 = arith.addf %571, %573 : vector<2x128xf32>
    %cst_32 = arith.constant 2.000000e-01 : f32
    %575 = vector.broadcast %cst_32 : f32 to vector<2x128xf32>
    %576 = arith.mulf %575, %574 : vector<2x128xf32>
    %577 = arith.maximumf %574, %576 : vector<2x128xf32>
    %c136 = arith.constant 136 : index
    %578 = memref.load %arg3[%c136] : memref<216xf32, #tpu.memory_space<smem>>
    %579 = vector.broadcast %578 : f32 to vector<2x128xf32>
    %580 = arith.mulf %579, %376 : vector<2x128xf32>
    %c137 = arith.constant 137 : index
    %581 = memref.load %arg3[%c137] : memref<216xf32, #tpu.memory_space<smem>>
    %582 = vector.broadcast %581 : f32 to vector<2x128xf32>
    %583 = arith.mulf %582, %429 : vector<2x128xf32>
    %584 = arith.addf %580, %583 : vector<2x128xf32>
    %c138 = arith.constant 138 : index
    %585 = memref.load %arg3[%c138] : memref<216xf32, #tpu.memory_space<smem>>
    %586 = vector.broadcast %585 : f32 to vector<2x128xf32>
    %587 = arith.mulf %586, %482 : vector<2x128xf32>
    %588 = arith.addf %584, %587 : vector<2x128xf32>
    %c139 = arith.constant 139 : index
    %589 = memref.load %arg3[%c139] : memref<216xf32, #tpu.memory_space<smem>>
    %590 = vector.broadcast %589 : f32 to vector<2x128xf32>
    %591 = arith.mulf %590, %535 : vector<2x128xf32>
    %592 = arith.addf %588, %591 : vector<2x128xf32>
    %c146 = arith.constant 146 : index
    %593 = memref.load %arg3[%c146] : memref<216xf32, #tpu.memory_space<smem>>
    %594 = vector.broadcast %593 : f32 to vector<2x128xf32>
    %595 = arith.addf %592, %594 : vector<2x128xf32>
    %cst_33 = arith.constant 2.000000e-01 : f32
    %596 = vector.broadcast %cst_33 : f32 to vector<2x128xf32>
    %597 = arith.mulf %596, %595 : vector<2x128xf32>
    %598 = arith.maximumf %595, %597 : vector<2x128xf32>
    %c140 = arith.constant 140 : index
    %599 = memref.load %arg3[%c140] : memref<216xf32, #tpu.memory_space<smem>>
    %600 = vector.broadcast %599 : f32 to vector<2x128xf32>
    %601 = arith.mulf %600, %376 : vector<2x128xf32>
    %c141 = arith.constant 141 : index
    %602 = memref.load %arg3[%c141] : memref<216xf32, #tpu.memory_space<smem>>
    %603 = vector.broadcast %602 : f32 to vector<2x128xf32>
    %604 = arith.mulf %603, %429 : vector<2x128xf32>
    %605 = arith.addf %601, %604 : vector<2x128xf32>
    %c142 = arith.constant 142 : index
    %606 = memref.load %arg3[%c142] : memref<216xf32, #tpu.memory_space<smem>>
    %607 = vector.broadcast %606 : f32 to vector<2x128xf32>
    %608 = arith.mulf %607, %482 : vector<2x128xf32>
    %609 = arith.addf %605, %608 : vector<2x128xf32>
    %c143 = arith.constant 143 : index
    %610 = memref.load %arg3[%c143] : memref<216xf32, #tpu.memory_space<smem>>
    %611 = vector.broadcast %610 : f32 to vector<2x128xf32>
    %612 = arith.mulf %611, %535 : vector<2x128xf32>
    %613 = arith.addf %609, %612 : vector<2x128xf32>
    %c147 = arith.constant 147 : index
    %614 = memref.load %arg3[%c147] : memref<216xf32, #tpu.memory_space<smem>>
    %615 = vector.broadcast %614 : f32 to vector<2x128xf32>
    %616 = arith.addf %613, %615 : vector<2x128xf32>
    %cst_34 = arith.constant 2.000000e-01 : f32
    %617 = vector.broadcast %cst_34 : f32 to vector<2x128xf32>
    %618 = arith.mulf %617, %616 : vector<2x128xf32>
    %619 = arith.maximumf %616, %618 : vector<2x128xf32>
    %c148 = arith.constant 148 : index
    %620 = memref.load %arg3[%c148] : memref<216xf32, #tpu.memory_space<smem>>
    %621 = vector.broadcast %620 : f32 to vector<2x128xf32>
    %622 = arith.mulf %621, %1 : vector<2x128xf32>
    %c149 = arith.constant 149 : index
    %623 = memref.load %arg3[%c149] : memref<216xf32, #tpu.memory_space<smem>>
    %624 = vector.broadcast %623 : f32 to vector<2x128xf32>
    %625 = arith.mulf %624, %3 : vector<2x128xf32>
    %626 = arith.addf %622, %625 : vector<2x128xf32>
    %c150 = arith.constant 150 : index
    %627 = memref.load %arg3[%c150] : memref<216xf32, #tpu.memory_space<smem>>
    %628 = vector.broadcast %627 : f32 to vector<2x128xf32>
    %629 = arith.mulf %628, %5 : vector<2x128xf32>
    %630 = arith.addf %626, %629 : vector<2x128xf32>
    %c151 = arith.constant 151 : index
    %631 = memref.load %arg3[%c151] : memref<216xf32, #tpu.memory_space<smem>>
    %632 = vector.broadcast %631 : f32 to vector<2x128xf32>
    %633 = arith.mulf %632, %7 : vector<2x128xf32>
    %634 = arith.addf %630, %633 : vector<2x128xf32>
    %c152 = arith.constant 152 : index
    %635 = memref.load %arg3[%c152] : memref<216xf32, #tpu.memory_space<smem>>
    %636 = vector.broadcast %635 : f32 to vector<2x128xf32>
    %637 = arith.mulf %636, %28 : vector<2x128xf32>
    %638 = arith.addf %634, %637 : vector<2x128xf32>
    %c153 = arith.constant 153 : index
    %639 = memref.load %arg3[%c153] : memref<216xf32, #tpu.memory_space<smem>>
    %640 = vector.broadcast %639 : f32 to vector<2x128xf32>
    %641 = arith.mulf %640, %49 : vector<2x128xf32>
    %642 = arith.addf %638, %641 : vector<2x128xf32>
    %c154 = arith.constant 154 : index
    %643 = memref.load %arg3[%c154] : memref<216xf32, #tpu.memory_space<smem>>
    %644 = vector.broadcast %643 : f32 to vector<2x128xf32>
    %645 = arith.mulf %644, %70 : vector<2x128xf32>
    %646 = arith.addf %642, %645 : vector<2x128xf32>
    %c155 = arith.constant 155 : index
    %647 = memref.load %arg3[%c155] : memref<216xf32, #tpu.memory_space<smem>>
    %648 = vector.broadcast %647 : f32 to vector<2x128xf32>
    %649 = arith.mulf %648, %91 : vector<2x128xf32>
    %650 = arith.addf %646, %649 : vector<2x128xf32>
    %c156 = arith.constant 156 : index
    %651 = memref.load %arg3[%c156] : memref<216xf32, #tpu.memory_space<smem>>
    %652 = vector.broadcast %651 : f32 to vector<2x128xf32>
    %653 = arith.mulf %652, %260 : vector<2x128xf32>
    %654 = arith.addf %650, %653 : vector<2x128xf32>
    %c157 = arith.constant 157 : index
    %655 = memref.load %arg3[%c157] : memref<216xf32, #tpu.memory_space<smem>>
    %656 = vector.broadcast %655 : f32 to vector<2x128xf32>
    %657 = arith.mulf %656, %281 : vector<2x128xf32>
    %658 = arith.addf %654, %657 : vector<2x128xf32>
    %c158 = arith.constant 158 : index
    %659 = memref.load %arg3[%c158] : memref<216xf32, #tpu.memory_space<smem>>
    %660 = vector.broadcast %659 : f32 to vector<2x128xf32>
    %661 = arith.mulf %660, %302 : vector<2x128xf32>
    %662 = arith.addf %658, %661 : vector<2x128xf32>
    %c159 = arith.constant 159 : index
    %663 = memref.load %arg3[%c159] : memref<216xf32, #tpu.memory_space<smem>>
    %664 = vector.broadcast %663 : f32 to vector<2x128xf32>
    %665 = arith.mulf %664, %323 : vector<2x128xf32>
    %666 = arith.addf %662, %665 : vector<2x128xf32>
    %c160 = arith.constant 160 : index
    %667 = memref.load %arg3[%c160] : memref<216xf32, #tpu.memory_space<smem>>
    %668 = vector.broadcast %667 : f32 to vector<2x128xf32>
    %669 = arith.mulf %668, %556 : vector<2x128xf32>
    %670 = arith.addf %666, %669 : vector<2x128xf32>
    %c161 = arith.constant 161 : index
    %671 = memref.load %arg3[%c161] : memref<216xf32, #tpu.memory_space<smem>>
    %672 = vector.broadcast %671 : f32 to vector<2x128xf32>
    %673 = arith.mulf %672, %577 : vector<2x128xf32>
    %674 = arith.addf %670, %673 : vector<2x128xf32>
    %c162 = arith.constant 162 : index
    %675 = memref.load %arg3[%c162] : memref<216xf32, #tpu.memory_space<smem>>
    %676 = vector.broadcast %675 : f32 to vector<2x128xf32>
    %677 = arith.mulf %676, %598 : vector<2x128xf32>
    %678 = arith.addf %674, %677 : vector<2x128xf32>
    %c163 = arith.constant 163 : index
    %679 = memref.load %arg3[%c163] : memref<216xf32, #tpu.memory_space<smem>>
    %680 = vector.broadcast %679 : f32 to vector<2x128xf32>
    %681 = arith.mulf %680, %619 : vector<2x128xf32>
    %682 = arith.addf %678, %681 : vector<2x128xf32>
    %c212 = arith.constant 212 : index
    %683 = memref.load %arg3[%c212] : memref<216xf32, #tpu.memory_space<smem>>
    %684 = vector.broadcast %683 : f32 to vector<2x128xf32>
    %685 = arith.addf %682, %684 : vector<2x128xf32>
    %cst_35 = arith.constant 2.000000e-01 : f32
    %686 = vector.broadcast %cst_35 : f32 to vector<2x128xf32>
    %687 = arith.mulf %686, %685 : vector<2x128xf32>
    %688 = arith.maximumf %685, %687 : vector<2x128xf32>
    %c164 = arith.constant 164 : index
    %689 = memref.load %arg3[%c164] : memref<216xf32, #tpu.memory_space<smem>>
    %690 = vector.broadcast %689 : f32 to vector<2x128xf32>
    %691 = arith.mulf %690, %1 : vector<2x128xf32>
    %c165 = arith.constant 165 : index
    %692 = memref.load %arg3[%c165] : memref<216xf32, #tpu.memory_space<smem>>
    %693 = vector.broadcast %692 : f32 to vector<2x128xf32>
    %694 = arith.mulf %693, %3 : vector<2x128xf32>
    %695 = arith.addf %691, %694 : vector<2x128xf32>
    %c166 = arith.constant 166 : index
    %696 = memref.load %arg3[%c166] : memref<216xf32, #tpu.memory_space<smem>>
    %697 = vector.broadcast %696 : f32 to vector<2x128xf32>
    %698 = arith.mulf %697, %5 : vector<2x128xf32>
    %699 = arith.addf %695, %698 : vector<2x128xf32>
    %c167 = arith.constant 167 : index
    %700 = memref.load %arg3[%c167] : memref<216xf32, #tpu.memory_space<smem>>
    %701 = vector.broadcast %700 : f32 to vector<2x128xf32>
    %702 = arith.mulf %701, %7 : vector<2x128xf32>
    %703 = arith.addf %699, %702 : vector<2x128xf32>
    %c168 = arith.constant 168 : index
    %704 = memref.load %arg3[%c168] : memref<216xf32, #tpu.memory_space<smem>>
    %705 = vector.broadcast %704 : f32 to vector<2x128xf32>
    %706 = arith.mulf %705, %28 : vector<2x128xf32>
    %707 = arith.addf %703, %706 : vector<2x128xf32>
    %c169 = arith.constant 169 : index
    %708 = memref.load %arg3[%c169] : memref<216xf32, #tpu.memory_space<smem>>
    %709 = vector.broadcast %708 : f32 to vector<2x128xf32>
    %710 = arith.mulf %709, %49 : vector<2x128xf32>
    %711 = arith.addf %707, %710 : vector<2x128xf32>
    %c170 = arith.constant 170 : index
    %712 = memref.load %arg3[%c170] : memref<216xf32, #tpu.memory_space<smem>>
    %713 = vector.broadcast %712 : f32 to vector<2x128xf32>
    %714 = arith.mulf %713, %70 : vector<2x128xf32>
    %715 = arith.addf %711, %714 : vector<2x128xf32>
    %c171 = arith.constant 171 : index
    %716 = memref.load %arg3[%c171] : memref<216xf32, #tpu.memory_space<smem>>
    %717 = vector.broadcast %716 : f32 to vector<2x128xf32>
    %718 = arith.mulf %717, %91 : vector<2x128xf32>
    %719 = arith.addf %715, %718 : vector<2x128xf32>
    %c172 = arith.constant 172 : index
    %720 = memref.load %arg3[%c172] : memref<216xf32, #tpu.memory_space<smem>>
    %721 = vector.broadcast %720 : f32 to vector<2x128xf32>
    %722 = arith.mulf %721, %260 : vector<2x128xf32>
    %723 = arith.addf %719, %722 : vector<2x128xf32>
    %c173 = arith.constant 173 : index
    %724 = memref.load %arg3[%c173] : memref<216xf32, #tpu.memory_space<smem>>
    %725 = vector.broadcast %724 : f32 to vector<2x128xf32>
    %726 = arith.mulf %725, %281 : vector<2x128xf32>
    %727 = arith.addf %723, %726 : vector<2x128xf32>
    %c174 = arith.constant 174 : index
    %728 = memref.load %arg3[%c174] : memref<216xf32, #tpu.memory_space<smem>>
    %729 = vector.broadcast %728 : f32 to vector<2x128xf32>
    %730 = arith.mulf %729, %302 : vector<2x128xf32>
    %731 = arith.addf %727, %730 : vector<2x128xf32>
    %c175 = arith.constant 175 : index
    %732 = memref.load %arg3[%c175] : memref<216xf32, #tpu.memory_space<smem>>
    %733 = vector.broadcast %732 : f32 to vector<2x128xf32>
    %734 = arith.mulf %733, %323 : vector<2x128xf32>
    %735 = arith.addf %731, %734 : vector<2x128xf32>
    %c176 = arith.constant 176 : index
    %736 = memref.load %arg3[%c176] : memref<216xf32, #tpu.memory_space<smem>>
    %737 = vector.broadcast %736 : f32 to vector<2x128xf32>
    %738 = arith.mulf %737, %556 : vector<2x128xf32>
    %739 = arith.addf %735, %738 : vector<2x128xf32>
    %c177 = arith.constant 177 : index
    %740 = memref.load %arg3[%c177] : memref<216xf32, #tpu.memory_space<smem>>
    %741 = vector.broadcast %740 : f32 to vector<2x128xf32>
    %742 = arith.mulf %741, %577 : vector<2x128xf32>
    %743 = arith.addf %739, %742 : vector<2x128xf32>
    %c178 = arith.constant 178 : index
    %744 = memref.load %arg3[%c178] : memref<216xf32, #tpu.memory_space<smem>>
    %745 = vector.broadcast %744 : f32 to vector<2x128xf32>
    %746 = arith.mulf %745, %598 : vector<2x128xf32>
    %747 = arith.addf %743, %746 : vector<2x128xf32>
    %c179 = arith.constant 179 : index
    %748 = memref.load %arg3[%c179] : memref<216xf32, #tpu.memory_space<smem>>
    %749 = vector.broadcast %748 : f32 to vector<2x128xf32>
    %750 = arith.mulf %749, %619 : vector<2x128xf32>
    %751 = arith.addf %747, %750 : vector<2x128xf32>
    %c213 = arith.constant 213 : index
    %752 = memref.load %arg3[%c213] : memref<216xf32, #tpu.memory_space<smem>>
    %753 = vector.broadcast %752 : f32 to vector<2x128xf32>
    %754 = arith.addf %751, %753 : vector<2x128xf32>
    %cst_36 = arith.constant 2.000000e-01 : f32
    %755 = vector.broadcast %cst_36 : f32 to vector<2x128xf32>
    %756 = arith.mulf %755, %754 : vector<2x128xf32>
    %757 = arith.maximumf %754, %756 : vector<2x128xf32>
    %c180 = arith.constant 180 : index
    %758 = memref.load %arg3[%c180] : memref<216xf32, #tpu.memory_space<smem>>
    %759 = vector.broadcast %758 : f32 to vector<2x128xf32>
    %760 = arith.mulf %759, %1 : vector<2x128xf32>
    %c181 = arith.constant 181 : index
    %761 = memref.load %arg3[%c181] : memref<216xf32, #tpu.memory_space<smem>>
    %762 = vector.broadcast %761 : f32 to vector<2x128xf32>
    %763 = arith.mulf %762, %3 : vector<2x128xf32>
    %764 = arith.addf %760, %763 : vector<2x128xf32>
    %c182 = arith.constant 182 : index
    %765 = memref.load %arg3[%c182] : memref<216xf32, #tpu.memory_space<smem>>
    %766 = vector.broadcast %765 : f32 to vector<2x128xf32>
    %767 = arith.mulf %766, %5 : vector<2x128xf32>
    %768 = arith.addf %764, %767 : vector<2x128xf32>
    %c183 = arith.constant 183 : index
    %769 = memref.load %arg3[%c183] : memref<216xf32, #tpu.memory_space<smem>>
    %770 = vector.broadcast %769 : f32 to vector<2x128xf32>
    %771 = arith.mulf %770, %7 : vector<2x128xf32>
    %772 = arith.addf %768, %771 : vector<2x128xf32>
    %c184 = arith.constant 184 : index
    %773 = memref.load %arg3[%c184] : memref<216xf32, #tpu.memory_space<smem>>
    %774 = vector.broadcast %773 : f32 to vector<2x128xf32>
    %775 = arith.mulf %774, %28 : vector<2x128xf32>
    %776 = arith.addf %772, %775 : vector<2x128xf32>
    %c185 = arith.constant 185 : index
    %777 = memref.load %arg3[%c185] : memref<216xf32, #tpu.memory_space<smem>>
    %778 = vector.broadcast %777 : f32 to vector<2x128xf32>
    %779 = arith.mulf %778, %49 : vector<2x128xf32>
    %780 = arith.addf %776, %779 : vector<2x128xf32>
    %c186 = arith.constant 186 : index
    %781 = memref.load %arg3[%c186] : memref<216xf32, #tpu.memory_space<smem>>
    %782 = vector.broadcast %781 : f32 to vector<2x128xf32>
    %783 = arith.mulf %782, %70 : vector<2x128xf32>
    %784 = arith.addf %780, %783 : vector<2x128xf32>
    %c187 = arith.constant 187 : index
    %785 = memref.load %arg3[%c187] : memref<216xf32, #tpu.memory_space<smem>>
    %786 = vector.broadcast %785 : f32 to vector<2x128xf32>
    %787 = arith.mulf %786, %91 : vector<2x128xf32>
    %788 = arith.addf %784, %787 : vector<2x128xf32>
    %c188 = arith.constant 188 : index
    %789 = memref.load %arg3[%c188] : memref<216xf32, #tpu.memory_space<smem>>
    %790 = vector.broadcast %789 : f32 to vector<2x128xf32>
    %791 = arith.mulf %790, %260 : vector<2x128xf32>
    %792 = arith.addf %788, %791 : vector<2x128xf32>
    %c189 = arith.constant 189 : index
    %793 = memref.load %arg3[%c189] : memref<216xf32, #tpu.memory_space<smem>>
    %794 = vector.broadcast %793 : f32 to vector<2x128xf32>
    %795 = arith.mulf %794, %281 : vector<2x128xf32>
    %796 = arith.addf %792, %795 : vector<2x128xf32>
    %c190 = arith.constant 190 : index
    %797 = memref.load %arg3[%c190] : memref<216xf32, #tpu.memory_space<smem>>
    %798 = vector.broadcast %797 : f32 to vector<2x128xf32>
    %799 = arith.mulf %798, %302 : vector<2x128xf32>
    %800 = arith.addf %796, %799 : vector<2x128xf32>
    %c191 = arith.constant 191 : index
    %801 = memref.load %arg3[%c191] : memref<216xf32, #tpu.memory_space<smem>>
    %802 = vector.broadcast %801 : f32 to vector<2x128xf32>
    %803 = arith.mulf %802, %323 : vector<2x128xf32>
    %804 = arith.addf %800, %803 : vector<2x128xf32>
    %c192 = arith.constant 192 : index
    %805 = memref.load %arg3[%c192] : memref<216xf32, #tpu.memory_space<smem>>
    %806 = vector.broadcast %805 : f32 to vector<2x128xf32>
    %807 = arith.mulf %806, %556 : vector<2x128xf32>
    %808 = arith.addf %804, %807 : vector<2x128xf32>
    %c193 = arith.constant 193 : index
    %809 = memref.load %arg3[%c193] : memref<216xf32, #tpu.memory_space<smem>>
    %810 = vector.broadcast %809 : f32 to vector<2x128xf32>
    %811 = arith.mulf %810, %577 : vector<2x128xf32>
    %812 = arith.addf %808, %811 : vector<2x128xf32>
    %c194 = arith.constant 194 : index
    %813 = memref.load %arg3[%c194] : memref<216xf32, #tpu.memory_space<smem>>
    %814 = vector.broadcast %813 : f32 to vector<2x128xf32>
    %815 = arith.mulf %814, %598 : vector<2x128xf32>
    %816 = arith.addf %812, %815 : vector<2x128xf32>
    %c195 = arith.constant 195 : index
    %817 = memref.load %arg3[%c195] : memref<216xf32, #tpu.memory_space<smem>>
    %818 = vector.broadcast %817 : f32 to vector<2x128xf32>
    %819 = arith.mulf %818, %619 : vector<2x128xf32>
    %820 = arith.addf %816, %819 : vector<2x128xf32>
    %c214 = arith.constant 214 : index
    %821 = memref.load %arg3[%c214] : memref<216xf32, #tpu.memory_space<smem>>
    %822 = vector.broadcast %821 : f32 to vector<2x128xf32>
    %823 = arith.addf %820, %822 : vector<2x128xf32>
    %cst_37 = arith.constant 2.000000e-01 : f32
    %824 = vector.broadcast %cst_37 : f32 to vector<2x128xf32>
    %825 = arith.mulf %824, %823 : vector<2x128xf32>
    %826 = arith.maximumf %823, %825 : vector<2x128xf32>
    %c196 = arith.constant 196 : index
    %827 = memref.load %arg3[%c196] : memref<216xf32, #tpu.memory_space<smem>>
    %828 = vector.broadcast %827 : f32 to vector<2x128xf32>
    %829 = arith.mulf %828, %1 : vector<2x128xf32>
    %c197 = arith.constant 197 : index
    %830 = memref.load %arg3[%c197] : memref<216xf32, #tpu.memory_space<smem>>
    %831 = vector.broadcast %830 : f32 to vector<2x128xf32>
    %832 = arith.mulf %831, %3 : vector<2x128xf32>
    %833 = arith.addf %829, %832 : vector<2x128xf32>
    %c198 = arith.constant 198 : index
    %834 = memref.load %arg3[%c198] : memref<216xf32, #tpu.memory_space<smem>>
    %835 = vector.broadcast %834 : f32 to vector<2x128xf32>
    %836 = arith.mulf %835, %5 : vector<2x128xf32>
    %837 = arith.addf %833, %836 : vector<2x128xf32>
    %c199 = arith.constant 199 : index
    %838 = memref.load %arg3[%c199] : memref<216xf32, #tpu.memory_space<smem>>
    %839 = vector.broadcast %838 : f32 to vector<2x128xf32>
    %840 = arith.mulf %839, %7 : vector<2x128xf32>
    %841 = arith.addf %837, %840 : vector<2x128xf32>
    %c200 = arith.constant 200 : index
    %842 = memref.load %arg3[%c200] : memref<216xf32, #tpu.memory_space<smem>>
    %843 = vector.broadcast %842 : f32 to vector<2x128xf32>
    %844 = arith.mulf %843, %28 : vector<2x128xf32>
    %845 = arith.addf %841, %844 : vector<2x128xf32>
    %c201 = arith.constant 201 : index
    %846 = memref.load %arg3[%c201] : memref<216xf32, #tpu.memory_space<smem>>
    %847 = vector.broadcast %846 : f32 to vector<2x128xf32>
    %848 = arith.mulf %847, %49 : vector<2x128xf32>
    %849 = arith.addf %845, %848 : vector<2x128xf32>
    %c202 = arith.constant 202 : index
    %850 = memref.load %arg3[%c202] : memref<216xf32, #tpu.memory_space<smem>>
    %851 = vector.broadcast %850 : f32 to vector<2x128xf32>
    %852 = arith.mulf %851, %70 : vector<2x128xf32>
    %853 = arith.addf %849, %852 : vector<2x128xf32>
    %c203 = arith.constant 203 : index
    %854 = memref.load %arg3[%c203] : memref<216xf32, #tpu.memory_space<smem>>
    %855 = vector.broadcast %854 : f32 to vector<2x128xf32>
    %856 = arith.mulf %855, %91 : vector<2x128xf32>
    %857 = arith.addf %853, %856 : vector<2x128xf32>
    %c204 = arith.constant 204 : index
    %858 = memref.load %arg3[%c204] : memref<216xf32, #tpu.memory_space<smem>>
    %859 = vector.broadcast %858 : f32 to vector<2x128xf32>
    %860 = arith.mulf %859, %260 : vector<2x128xf32>
    %861 = arith.addf %857, %860 : vector<2x128xf32>
    %c205 = arith.constant 205 : index
    %862 = memref.load %arg3[%c205] : memref<216xf32, #tpu.memory_space<smem>>
    %863 = vector.broadcast %862 : f32 to vector<2x128xf32>
    %864 = arith.mulf %863, %281 : vector<2x128xf32>
    %865 = arith.addf %861, %864 : vector<2x128xf32>
    %c206 = arith.constant 206 : index
    %866 = memref.load %arg3[%c206] : memref<216xf32, #tpu.memory_space<smem>>
    %867 = vector.broadcast %866 : f32 to vector<2x128xf32>
    %868 = arith.mulf %867, %302 : vector<2x128xf32>
    %869 = arith.addf %865, %868 : vector<2x128xf32>
    %c207 = arith.constant 207 : index
    %870 = memref.load %arg3[%c207] : memref<216xf32, #tpu.memory_space<smem>>
    %871 = vector.broadcast %870 : f32 to vector<2x128xf32>
    %872 = arith.mulf %871, %323 : vector<2x128xf32>
    %873 = arith.addf %869, %872 : vector<2x128xf32>
    %c208 = arith.constant 208 : index
    %874 = memref.load %arg3[%c208] : memref<216xf32, #tpu.memory_space<smem>>
    %875 = vector.broadcast %874 : f32 to vector<2x128xf32>
    %876 = arith.mulf %875, %556 : vector<2x128xf32>
    %877 = arith.addf %873, %876 : vector<2x128xf32>
    %c209 = arith.constant 209 : index
    %878 = memref.load %arg3[%c209] : memref<216xf32, #tpu.memory_space<smem>>
    %879 = vector.broadcast %878 : f32 to vector<2x128xf32>
    %880 = arith.mulf %879, %577 : vector<2x128xf32>
    %881 = arith.addf %877, %880 : vector<2x128xf32>
    %c210 = arith.constant 210 : index
    %882 = memref.load %arg3[%c210] : memref<216xf32, #tpu.memory_space<smem>>
    %883 = vector.broadcast %882 : f32 to vector<2x128xf32>
    %884 = arith.mulf %883, %598 : vector<2x128xf32>
    %885 = arith.addf %881, %884 : vector<2x128xf32>
    %c211 = arith.constant 211 : index
    %886 = memref.load %arg3[%c211] : memref<216xf32, #tpu.memory_space<smem>>
    %887 = vector.broadcast %886 : f32 to vector<2x128xf32>
    %888 = arith.mulf %887, %619 : vector<2x128xf32>
    %889 = arith.addf %885, %888 : vector<2x128xf32>
    %c215 = arith.constant 215 : index
    %890 = memref.load %arg3[%c215] : memref<216xf32, #tpu.memory_space<smem>>
    %891 = vector.broadcast %890 : f32 to vector<2x128xf32>
    %892 = arith.addf %889, %891 : vector<2x128xf32>
    %cst_38 = arith.constant 2.000000e-01 : f32
    %893 = vector.broadcast %cst_38 : f32 to vector<2x128xf32>
    %894 = arith.mulf %893, %892 : vector<2x128xf32>
    %895 = arith.maximumf %892, %894 : vector<2x128xf32>
    %c0_39 = arith.constant 0 : index
    %c0_40 = arith.constant 0 : index
    %c0_41 = arith.constant 0 : index
    %c0_42 = arith.constant 0 : index
    %896 = vector.load %arg4[%c0_39, %c0_40, %c0_41, %c0_42] : memref<1x4x2x128xf32, #tpu.memory_space<vmem>>, vector<1x1x2x128xf32>
    %897 = vector.shape_cast %896 : vector<1x1x2x128xf32> to vector<2x128xf32>
    %898 = vector.shape_cast %688 : vector<2x128xf32> to vector<1x1x2x128xf32>
    tpu.vector_store %arg4[%c0_39, %c0_40, %c0_41, %c0_42], %898 {strides = array<i32>} : memref<1x4x2x128xf32, #tpu.memory_space<vmem>>, vector<1x1x2x128xf32>,
    %c0_43 = arith.constant 0 : index
    %c1_44 = arith.constant 1 : index
    %c0_45 = arith.constant 0 : index
    %c0_46 = arith.constant 0 : index
    %899 = vector.load %arg4[%c0_43, %c1_44, %c0_45, %c0_46] : memref<1x4x2x128xf32, #tpu.memory_space<vmem>>, vector<1x1x2x128xf32>
    %900 = vector.shape_cast %899 : vector<1x1x2x128xf32> to vector<2x128xf32>
    %901 = vector.shape_cast %757 : vector<2x128xf32> to vector<1x1x2x128xf32>
    tpu.vector_store %arg4[%c0_43, %c1_44, %c0_45, %c0_46], %901 {strides = array<i32>} : memref<1x4x2x128xf32, #tpu.memory_space<vmem>>, vector<1x1x2x128xf32>,
    %c0_47 = arith.constant 0 : index
    %c2_48 = arith.constant 2 : index
    %c0_49 = arith.constant 0 : index
    %c0_50 = arith.constant 0 : index
    %902 = vector.load %arg4[%c0_47, %c2_48, %c0_49, %c0_50] : memref<1x4x2x128xf32, #tpu.memory_space<vmem>>, vector<1x1x2x128xf32>
    %903 = vector.shape_cast %902 : vector<1x1x2x128xf32> to vector<2x128xf32>
    %904 = vector.shape_cast %826 : vector<2x128xf32> to vector<1x1x2x128xf32>
    tpu.vector_store %arg4[%c0_47, %c2_48, %c0_49, %c0_50], %904 {strides = array<i32>} : memref<1x4x2x128xf32, #tpu.memory_space<vmem>>, vector<1x1x2x128xf32>,
    %c0_51 = arith.constant 0 : index
    %c3_52 = arith.constant 3 : index
    %c0_53 = arith.constant 0 : index
    %c0_54 = arith.constant 0 : index
    %905 = vector.load %arg4[%c0_51, %c3_52, %c0_53, %c0_54] : memref<1x4x2x128xf32, #tpu.memory_space<vmem>>, vector<1x1x2x128xf32>
    %906 = vector.shape_cast %905 : vector<1x1x2x128xf32> to vector<2x128xf32>
    %907 = vector.shape_cast %895 : vector<2x128xf32> to vector<1x1x2x128xf32>
    tpu.vector_store %arg4[%c0_51, %c3_52, %c0_53, %c0_54], %907 {strides = array<i32>} : memref<1x4x2x128xf32, #tpu.memory_space<vmem>>, vector<1x1x2x128xf32>,
    return
  }
  func.func @transform_0(%arg0: i32, %arg1: i32) -> (i32, i32, i32, i32) {
    %c0_i32 = arith.constant 0 : i32
    %c0_i32_0 = arith.constant 0 : i32
    %c0_i32_1 = arith.constant 0 : i32
    return %arg0, %c0_i32, %arg1, %c0_i32_0 : i32, i32, i32, i32
  }
  func.func @transform_1(%arg0: i32, %arg1: i32) -> i32 {
    %c0_i32 = arith.constant 0 : i32
    %c0_i32_0 = arith.constant 0 : i32
    return %c0_i32 : i32
  }
  func.func @transform_2(%arg0: i32, %arg1: i32) -> (i32, i32, i32, i32) {
    %c0_i32 = arith.constant 0 : i32
    %c0_i32_0 = arith.constant 0 : i32
    %c0_i32_1 = arith.constant 0 : i32
    return %arg0, %c0_i32, %arg1, %c0_i32_0 : i32, i32, i32, i32
  }
}

</mosaic_0001>

<llo_original>
// kernel: tpu_custom_call.1
$region0: #{tpu_custom_call.1}
  #allocation0 [shape = 'u32[]', space=smem, size = 0x4, offset = 0x4, fixed_abs, tag = 'smem constant byte address 0x4 - core index']
  #allocation1 [shape = 'u32[72,128]{1,0:T(1,128)}', space=vmem, size = 0x9000, scoped, tag = 'internal scratch']
  %s0 = inlined_call_operand.hbm [shape: f32[2,4,2,128], index: 0, kind: input, shape index: {}]
  %s1 = inlined_call_operand.hbm [shape: f32[216], index: 1, kind: input, shape index: {}]
  %s2 = inlined_call_operand.hbm [shape: f32[2,4,2,128], index: 2, kind: output, shape index: {}]
  %s3 = sld [smem:[#allocation0]]
  $region49: #{tpu_custom_call.1} parent=0
    _
  %s5 = ssub.s32 1, %s3
  %s6 = scalar_select 0, %s5, %s3
  $region1: #{tpu_custom_call.1} parent=0
    #allocation2 [shape = 'u8[8192]{0}', space=vmem, size = 0x2000, scoped, tag = 'input window, operand 0']
    #allocation3 [shape = 's32[2]{0}', space=sflag, size = 0x8, scoped, tag = 'scoped memory for tpu_custom_call.1']
    #allocation4 [shape = 's32[2]{0}', space=sflag, size = 0x8, scoped, tag = 'scoped memory for tpu_custom_call.1']
    #allocation5 [shape = 's32[2]{0}', space=sflag, size = 0x8, scoped, tag = 'scoped memory for tpu_custom_call.1']
    #allocation6 [shape = 'u8[1024]{0}', space=smem, size = 0x400, scoped, tag = 'input window, operand 1, single buffered']
    #allocation7 [shape = 'u8[8192]{0}', space=vmem, size = 0x2000, scoped, tag = 'output window, operand 0']
    %7 = vsyncpa [#allocation3], 0
    %s8 = scalar_lea.sflag [#allocation3], 1
    %9 = vsyncpa %s8, 0
    %10 = vsyncpa [#allocation5], 0
    %11 = vsyncpa [#allocation4], 0
    %s12 = scalar_lea.sflag [#allocation4], 1
    %13 = vsyncpa %s12, 0
    loop: start=0, step=1, limit=4
    $region2: #{tpu_custom_call.1} parent=1 // loop_pre_header
      _
    $region3: #{tpu_custom_call.1} parent=1 // loop_header
      %s15 = sphi 0, %s19
      %p16 = scmp.ge.s32.totalorder %s15, 4
      %s22 = sphi 0, %s34
      %s23 = sphi 0, %s30
      %s24 = sphi 0, %s22
      %s25 = sphi 0, %s23
      %s26 = sphi 0, %s24
      %s27 = sphi 0, %s25
      %s39 = sphi 0, %s41
      %s42 = sphi 0, %s39
      %s43 = sphi 0, %s42
      %s59 = sphi 0, %s43
      %s63 = sphi 0, %s63
      %s65 = sphi 0, %s63
      %s66 = sphi 0, %s65
      %s80 = sphi 0, %s66
      %s88 = sphi 0, %s90
      %s91 = sphi 0, %s88
      %s92 = sphi 0, %s91
      %s108 = sphi 0, %s92
    $region4: #{tpu_custom_call.1} parent=1 // loop_header_branch
      %18 = sbr.rel (%p16) target = $region8
    $region5: #{tpu_custom_call.1} parent=1 // loop_body
      %s20 = ssub.s32 %s15, 1
      %s21 = ssub.s32 %s15, 2
      %s28 = sadd.s32 1, %s23
      %p29 = scmp.ge.s32.totalorder %s28, 1
      %s30 = scalar_select %p29, 0, %s28
      %s31 = sadd.s32 1, %s22
      %s32 = scalar_select %p29, %s31, %s22
      %p33 = scmp.ge.s32.totalorder %s32, 2
      %s34 = scalar_select %p33, 0, %s32
      %s35 = ssub.s32 %s22, %s34
      %s36 = ssub.s32 %s23, %s30
      %s37 = sor.u32 %s35, %s36
      %p38 = scmp.eq.s32.totalorder %s37, 0
      %s40 = sadd.s32 %s39, 1
      %s41 = scalar_select %p38, %s39, %s40
      %p44 = pneg %p38
      %p45 = scmp.eq.s32.totalorder %s15, 1
      %p46 = por %p44, %p45
      %p47 = scmp.ne.s32.totalorder %s39, %s42
      %p48 = scmp.eq.s32.totalorder %s15, 0
      %p49 = por %p47, %p48
      %p50 = scmp.ne.s32.totalorder %s39, %s42
      %p51 = scmp.eq.s32.totalorder %s20, 1
      %p52 = por %p50, %p51
      %p53 = scmp.ne.s32.totalorder %s42, %s43
      %p54 = scmp.eq.s32.totalorder %s20, 0
      %p55 = por %p53, %p54
      %p56 = scmp.ne.s32.totalorder %s42, %s43
      %p57 = scmp.eq.s32.totalorder %s21, 1
      %p58 = por %p56, %p57
      %p60 = scmp.ne.s32.totalorder %s43, %s59
      %p61 = scmp.eq.s32.totalorder %s21, 0
      %p62 = por %p60, %p61
      %s64 = sadd.s32 %s63, 1
      %p67 = scmp.eq.s32.totalorder %s15, 1
      %p68 = scmp.ne.s32.totalorder %s63, %s65
      %p69 = scmp.eq.s32.totalorder %s15, 0
      %p70 = por %p68, %p69
      %p71 = scmp.ne.s32.totalorder %s63, %s65
      %p72 = scmp.eq.s32.totalorder %s20, 1
      %p73 = por %p71, %p72
      %p74 = scmp.ne.s32.totalorder %s65, %s66
      %p75 = scmp.eq.s32.totalorder %s20, 0
      %p76 = por %p74, %p75
      %p77 = scmp.ne.s32.totalorder %s65, %s66
      %p78 = scmp.eq.s32.totalorder %s21, 1
      %p79 = por %p77, %p78
      %p81 = scmp.ne.s32.totalorder %s66, %s80
      %p82 = scmp.eq.s32.totalorder %s21, 0
      %p83 = por %p81, %p82
      %s84 = ssub.s32 %s22, %s34
      %s85 = ssub.s32 %s23, %s30
      %s86 = sor.u32 %s84, %s85
      %p87 = scmp.eq.s32.totalorder %s86, 0
      %s89 = sadd.s32 %s88, 1
      %s90 = scalar_select %p87, %s88, %s89
      %p93 = pneg %p87
      %p94 = scmp.eq.s32.totalorder %s15, 1
      %p95 = por %p93, %p94
      %p96 = scmp.ne.s32.totalorder %s88, %s91
      %p97 = scmp.eq.s32.totalorder %s15, 0
      %p98 = por %p96, %p97
      %p99 = scmp.ne.s32.totalorder %s88, %s91
      %p100 = scmp.eq.s32.totalorder %s20, 1
      %p101 = por %p99, %p100
      %p102 = scmp.ne.s32.totalorder %s91, %s92
      %p103 = scmp.eq.s32.totalorder %s20, 0
      %p104 = por %p102, %p103
      %p105 = scmp.ne.s32.totalorder %s91, %s92
      %p106 = scmp.eq.s32.totalorder %s21, 1
      %p107 = por %p105, %p106
      %p109 = scmp.ne.s32.totalorder %s92, %s108
      %p110 = scmp.eq.s32.totalorder %s21, 0
      %p111 = por %p109, %p110
      %p112 = scmp.le.s32.totalorder 1, %s15
      %p113 = scmp.lt.s32.totalorder %s15, 3
      %p114 = pnand %p112, %p113
      %p115 = pneg %p114
      // Predicated region
      $region9: #{tpu_custom_call.1} parent=5 // pred_check
        _
      $region10: #{tpu_custom_call.1} parent=5 // pred_check_branch
        %117 = sbr.rel (%p114) target = $region12
      $region11: #{tpu_custom_call.1} parent=5 // pred_region
        %s118 = ssub.s32 %s15, 1
        // Predicated region
        $region13: #{tpu_custom_call.1} parent=11 // pred_check
          %p119 = pneg %p76
        $region14: #{tpu_custom_call.1} parent=11 // pred_check_branch
          %121 = sbr.rel (%p119) target = $region16
        $region15: #{tpu_custom_call.1} parent=11 // pred_region
          %123 = vsyncadd [#allocation5], 0
          %s125 = sshll.u32 %s1, 4
          %s126 = int_to_ptr.hbm [resolvable:$true] %s125
          %128 = dma.hbm_to_smem %s126, 32, [#allocation6], [#allocation5]
        $region16: #{tpu_custom_call.1} parent=11 // pred_fallthru
          _
      $region12: #{tpu_custom_call.1} parent=5 // pred_fallthru
        _
      %p129 = scmp.lt.s32.totalorder %s15, 2
      // Predicated region
      $region17: #{tpu_custom_call.1} parent=5 // pred_check
        %p130 = pneg %p129
      $region18: #{tpu_custom_call.1} parent=5 // pred_check_branch
        %132 = sbr.rel (%p130) target = $region20
      $region19: #{tpu_custom_call.1} parent=5 // pred_region
        // Predicated region
        $region21: #{tpu_custom_call.1} parent=19 // pred_check
          %p133 = pneg %p49
        $region22: #{tpu_custom_call.1} parent=19 // pred_check_branch
          %135 = sbr.rel (%p133) target = $region24
        $region23: #{tpu_custom_call.1} parent=19 // pred_region
          %s136 = sand.u32 %s39, 1
          %s137 = scalar_lea.sflag [#allocation3], %s136
          %s138 = sand.u32 %s39, 1
          %s139 = smul.addr %s138, 8
          %s140 = scalar_lea.vmem [#allocation2], %s139
          %142 = vsyncadd %s137, 0
          %s143 = smul.addr %s22, 4
          %s144 = sadd.s32 %s23, %s143
          %s145 = smul.addr %s144, 2
          %s146 = scalar_lea.hbm %s0, %s145
          %s147 = sshll.u32 %s146, 4
          %s148 = int_to_ptr.hbm [resolvable:$true] %s147
          %s149 = sshll.u32 %s140, 4
          %s150 = int_to_ptr.vmem [resolvable:$true] %s149
          %155 = dma.hbm_to_vmem [thread:$0]  %s148, 128, %s150, %s137, 32, 32, 2
        $region24: #{tpu_custom_call.1} parent=19 // pred_fallthru
          _
      $region20: #{tpu_custom_call.1} parent=5 // pred_fallthru
        _
      %p156 = scmp.le.s32.totalorder 1, %s15
      %p157 = scmp.lt.s32.totalorder %s15, 3
      %p158 = pnand %p156, %p157
      %p159 = pneg %p158
      // Predicated region
      $region25: #{tpu_custom_call.1} parent=5 // pred_check
        _
      $region26: #{tpu_custom_call.1} parent=5 // pred_check_branch
        %161 = sbr.rel (%p158) target = $region28
      $region27: #{tpu_custom_call.1} parent=5 // pred_region
        %s162 = ssub.s32 %s15, 1
        %s163 = sand.u32 %s42, 1
        %s164 = scalar_lea.sflag [#allocation3], %s163
        %s165 = sand.u32 %s42, 1
        %s166 = smul.addr %s165, 8
        %s167 = scalar_lea.vmem [#allocation2], %s166
        // Predicated region
        $region29: #{tpu_custom_call.1} parent=27 // pred_check
          %p168 = pneg %p55
        $region30: #{tpu_custom_call.1} parent=27 // pred_check_branch
          %170 = sbr.rel (%p168) target = $region32
        $region31: #{tpu_custom_call.1} parent=27 // pred_region
          %172 = dma.done %s164, 128
        $region32: #{tpu_custom_call.1} parent=27 // pred_fallthru
          _
        // Predicated region
        $region33: #{tpu_custom_call.1} parent=27 // pred_check
          %p173 = pneg %p76
        $region34: #{tpu_custom_call.1} parent=27 // pred_check_branch
          %175 = sbr.rel (%p173) target = $region36
        $region35: #{tpu_custom_call.1} parent=27 // pred_region
          %177 = dma.done [#allocation5], 32
        $region36: #{tpu_custom_call.1} parent=27 // pred_fallthru
          _
        %178 = sfence
        %s179 = sand.u32 %s42, 1
        %s180 = scalar_lea.sflag [#allocation3], %s179
        %s181 = sand.u32 %s42, 1
        %s182 = smul.addr %s181, 8
        %s183 = scalar_lea.vmem [#allocation2], %s182
        %p184 = pneg %p55
        %p185 = pneg %p52
        %p186 = pneg %p76
        %p187 = pneg %p73
        %p188 = pneg %p104
        %p189 = pneg %p101
        %s190 = sand.u32 %s91, 1
        %s191 = scalar_lea.sflag [#allocation4], %s190
        %s192 = sand.u32 %s91, 1
        %s193 = smul.addr %s192, 8
        %s194 = scalar_lea.vmem [#allocation7], %s193
        %v195 = vld [vmem:[%s167] sm:$0x3]
        %s196 = scalar_lea.vmem %s167, 2 [#allocation2]
        %v197 = vld [vmem:[%s196] sm:$0x3]
        %s198 = scalar_lea.vmem %s167, 4 [#allocation2]
        %v199 = vld [vmem:[%s198] sm:$0x3]
        %s200 = scalar_lea.vmem %s167, 6 [#allocation2]
        %v201 = vld [vmem:[%s200] sm:$0x3]
        %s202 = sld [smem:[#allocation6]]
        %v203 = vstv %s202
        %v204 = vmul.f32 %v203, %v195
        %s205 = sld [smem:[#allocation6 + $0x1]]
        %v206 = vstv %s205
        %v207 = vmul.f32 %v206, %v197
        %v208 = vadd.f32 %v204, %v207
        %s209 = sld [smem:[#allocation6 + $0x2]]
        %v210 = vstv %s209
        %v211 = vmul.f32 %v210, %v199
        %v212 = vadd.f32 %v208, %v211
        %s213 = sld [smem:[#allocation6 + $0x3]]
        %v214 = vstv %s213
        %v215 = vmul.f32 %v214, %v201
        %v216 = vadd.f32 %v212, %v215
        %s217 = sld [smem:[#allocation6 + $0x10]]
        %v218 = vstv %s217
        %v219 = vadd.f32 %v216, %v218
        %v220 = vmul.f32 %v219, 0.2
        %v221 = vmax.f32 %v219, %v220
        %s222 = sld [smem:[#allocation6 + $0x4]]
        %v223 = vstv %s222
        %v224 = vmul.f32 %v223, %v195
        %s225 = sld [smem:[#allocation6 + $0x5]]
        %v226 = vstv %s225
        %v227 = vmul.f32 %v226, %v197
        %v228 = vadd.f32 %v224, %v227
        %s229 = sld [smem:[#allocation6 + $0x6]]
        %v230 = vstv %s229
        %v231 = vmul.f32 %v230, %v199
        %v232 = vadd.f32 %v228, %v231
        %s233 = sld [smem:[#allocation6 + $0x7]]
        %v234 = vstv %s233
        %v235 = vmul.f32 %v234, %v201
        %v236 = vadd.f32 %v232, %v235
        %s237 = sld [smem:[#allocation6 + $0x11]]
        %v238 = vstv %s237
        %v239 = vadd.f32 %v236, %v238
        %v240 = vmul.f32 %v239, 0.2
        %v241 = vmax.f32 %v239, %v240
        %s242 = sld [smem:[#allocation6 + $0x8]]
        %v243 = vstv %s242
        %v244 = vmul.f32 %v243, %v195
        %s245 = sld [smem:[#allocation6 + $0x9]]
        %v246 = vstv %s245
        %v247 = vmul.f32 %v246, %v197
        %v248 = vadd.f32 %v244, %v247
        %s249 = sld [smem:[#allocation6 + $0xa]]
        %v250 = vstv %s249
        %v251 = vmul.f32 %v250, %v199
        %v252 = vadd.f32 %v248, %v251
        %s253 = sld [smem:[#allocation6 + $0xb]]
        %v254 = vstv %s253
        %v255 = vmul.f32 %v254, %v201
        %v256 = vadd.f32 %v252, %v255
        %s257 = sld [smem:[#allocation6 + $0x12]]
        %v258 = vstv %s257
        %v259 = vadd.f32 %v256, %v258
        %v260 = vmul.f32 %v259, 0.2
        %v261 = vmax.f32 %v259, %v260
        %s262 = sld [smem:[#allocation6 + $0xc]]
        %v263 = vstv %s262
        %v264 = vmul.f32 %v263, %v195
        %s265 = sld [smem:[#allocation6 + $0xd]]
        %v266 = vstv %s265
        %v267 = vmul.f32 %v266, %v197
        %v268 = vadd.f32 %v264, %v267
        %s269 = sld [smem:[#allocation6 + $0xe]]
        %v270 = vstv %s269
        %v271 = vmul.f32 %v270, %v199
        %v272 = vadd.f32 %v268, %v271
        %s273 = sld [smem:[#allocation6 + $0xf]]
        %v274 = vstv %s273
        %v275 = vmul.f32 %v274, %v201
        %v276 = vadd.f32 %v272, %v275
        %s277 = sld [smem:[#allocation6 + $0x13]]
        %v278 = vstv %s277
        %v279 = vadd.f32 %v276, %v278
        %v280 = vmul.f32 %v279, 0.2
        %v281 = vmax.f32 %v279, %v280
        %s282 = sld [smem:[#allocation6 + $0x14]]
        %v283 = vstv %s282
        %v284 = vmul.f32 %v283, %v195
        %s285 = sld [smem:[#allocation6 + $0x15]]
        %v286 = vstv %s285
        %v287 = vmul.f32 %v286, %v197
        %v288 = vadd.f32 %v284, %v287
        %s289 = sld [smem:[#allocation6 + $0x16]]
        %v290 = vstv %s289
        %v291 = vmul.f32 %v290, %v199
        %v292 = vadd.f32 %v288, %v291
        %s293 = sld [smem:[#allocation6 + $0x17]]
        %v294 = vstv %s293
        %v295 = vmul.f32 %v294, %v201
        %v296 = vadd.f32 %v292, %v295
        %s297 = sld [smem:[#allocation6 + $0x18]]
        %v298 = vstv %s297
        %v299 = vmul.f32 %v298, %v221
        %v300 = vadd.f32 %v296, %v299
        %s301 = sld [smem:[#allocation6 + $0x19]]
        %v302 = vstv %s301
        %v303 = vmul.f32 %v302, %v241
        %v304 = vadd.f32 %v300, %v303
        %s305 = sld [smem:[#allocation6 + $0x1a]]
        %v306 = vstv %s305
        %v307 = vmul.f32 %v306, %v261
        %v308 = vadd.f32 %v304, %v307
        %s309 = sld [smem:[#allocation6 + $0x1b]]
        %v310 = vstv %s309
        %v311 = vmul.f32 %v310, %v281
        %v312 = vadd.f32 %v308, %v311
        %s313 = sld [smem:[#allocation6 + $0x34]]
        %v314 = vstv %s313
        %v315 = vadd.f32 %v312, %v314
        %v316 = vmul.f32 %v315, 0.2
        %v317 = vmax.f32 %v315, %v316
        %s318 = sld [smem:[#allocation6 + $0x1c]]
        %v319 = vstv %s318
        %v320 = vmul.f32 %v319, %v195
        %s321 = sld [smem:[#allocation6 + $0x1d]]
        %v322 = vstv %s321
        %v323 = vmul.f32 %v322, %v197
        %v324 = vadd.f32 %v320, %v323
        %s325 = sld [smem:[#allocation6 + $0x1e]]
        %v326 = vstv %s325
        %v327 = vmul.f32 %v326, %v199
        %v328 = vadd.f32 %v324, %v327
        %s329 = sld [smem:[#allocation6 + $0x1f]]
        %v330 = vstv %s329
        %v331 = vmul.f32 %v330, %v201
        %v332 = vadd.f32 %v328, %v331
        %s333 = sld [smem:[#allocation6 + $0x20]]
        %v334 = vstv %s333
        %v335 = vmul.f32 %v334, %v221
        %v336 = vadd.f32 %v332, %v335
        %s337 = sld [smem:[#allocation6 + $0x21]]
        %v338 = vstv %s337
        %v339 = vmul.f32 %v338, %v241
        %v340 = vadd.f32 %v336, %v339
        %s341 = sld [smem:[#allocation6 + $0x22]]
        %v342 = vstv %s341
        %v343 = vmul.f32 %v342, %v261
        %v344 = vadd.f32 %v340, %v343
        %s345 = sld [smem:[#allocation6 + $0x23]]
        %v346 = vstv %s345
        %v347 = vmul.f32 %v346, %v281
        %v348 = vadd.f32 %v344, %v347
        %s349 = sld [smem:[#allocation6 + $0x35]]
        %v350 = vstv %s349
        %v351 = vadd.f32 %v348, %v350
        %v352 = vmul.f32 %v351, 0.2
        %v353 = vmax.f32 %v351, %v352
        %s354 = sld [smem:[#allocation6 + $0x24]]
        %v355 = vstv %s354
        %v356 = vmul.f32 %v355, %v195
        %s357 = sld [smem:[#allocation6 + $0x25]]
        %v358 = vstv %s357
        %v359 = vmul.f32 %v358, %v197
        %v360 = vadd.f32 %v356, %v359
        %s361 = sld [smem:[#allocation6 + $0x26]]
        %v362 = vstv %s361
        %v363 = vmul.f32 %v362, %v199
        %v364 = vadd.f32 %v360, %v363
        %s365 = sld [smem:[#allocation6 + $0x27]]
        %v366 = vstv %s365
        %v367 = vmul.f32 %v366, %v201
        %v368 = vadd.f32 %v364, %v367
        %s369 = sld [smem:[#allocation6 + $0x28]]
        %v370 = vstv %s369
        %v371 = vmul.f32 %v370, %v221
        %v372 = vadd.f32 %v368, %v371
        %s373 = sld [smem:[#allocation6 + $0x29]]
        %v374 = vstv %s373
        %v375 = vmul.f32 %v374, %v241
        %v376 = vadd.f32 %v372, %v375
        %s377 = sld [smem:[#allocation6 + $0x2a]]
        %v378 = vstv %s377
        %v379 = vmul.f32 %v378, %v261
        %v380 = vadd.f32 %v376, %v379
        %s381 = sld [smem:[#allocation6 + $0x2b]]
        %v382 = vstv %s381
        %v383 = vmul.f32 %v382, %v281
        %v384 = vadd.f32 %v380, %v383
        %s385 = sld [smem:[#allocation6 + $0x36]]
        %v386 = vstv %s385
        %v387 = vadd.f32 %v384, %v386
        %v388 = vmul.f32 %v387, 0.2
        %v389 = vmax.f32 %v387, %v388
        %s390 = sld [smem:[#allocation6 + $0x2c]]
        %v391 = vstv %s390
        %v392 = vmul.f32 %v391, %v195
        %s393 = sld [smem:[#allocation6 + $0x2d]]
        %v394 = vstv %s393
        %v395 = vmul.f32 %v394, %v197
        %v396 = vadd.f32 %v392, %v395
        %s397 = sld [smem:[#allocation6 + $0x2e]]
        %v398 = vstv %s397
        %v399 = vmul.f32 %v398, %v199
        %v400 = vadd.f32 %v396, %v399
        %s401 = sld [smem:[#allocation6 + $0x2f]]
        %v402 = vstv %s401
        %v403 = vmul.f32 %v402, %v201
        %v404 = vadd.f32 %v400, %v403
        %s405 = sld [smem:[#allocation6 + $0x30]]
        %v406 = vstv %s405
        %v407 = vmul.f32 %v406, %v221
        %v408 = vadd.f32 %v404, %v407
        %s409 = sld [smem:[#allocation6 + $0x31]]
        %v410 = vstv %s409
        %v411 = vmul.f32 %v410, %v241
        %v412 = vadd.f32 %v408, %v411
        %s413 = sld [smem:[#allocation6 + $0x32]]
        %v414 = vstv %s413
        %v415 = vmul.f32 %v414, %v261
        %v416 = vadd.f32 %v412, %v415
        %s417 = sld [smem:[#allocation6 + $0x33]]
        %v418 = vstv %s417
        %v419 = vmul.f32 %v418, %v281
        %v420 = vadd.f32 %v416, %v419
        %s421 = sld [smem:[#allocation6 + $0x37]]
        %v422 = vstv %s421
        %v423 = vadd.f32 %v420, %v422
        %v424 = vmul.f32 %v423, 0.2
        %v425 = vmax.f32 %v423, %v424
        %s426 = sld [smem:[#allocation6 + $0x38]]
        %v427 = vstv %s426
        %v428 = vmul.f32 %v427, %v317
        %s429 = sld [smem:[#allocation6 + $0x39]]
        %v430 = vstv %s429
        %v431 = vmul.f32 %v430, %v353
        %v432 = vadd.f32 %v428, %v431
        %s433 = sld [smem:[#allocation6 + $0x3a]]
        %v434 = vstv %s433
        %v435 = vmul.f32 %v434, %v389
        %v436 = vadd.f32 %v432, %v435
        %s437 = sld [smem:[#allocation6 + $0x3b]]
        %v438 = vstv %s437
        %v439 = vmul.f32 %v438, %v425
        %v440 = vadd.f32 %v436, %v439
        %s441 = sld [smem:[#allocation6 + $0x48]]
        %v442 = vstv %s441
        %v443 = vadd.f32 %v440, %v442
        %v444 = vmul.f32 %v443, 0.2
        %v445 = vmax.f32 %v443, %v444
        %s446 = sld [smem:[#allocation6 + $0x3c]]
        %v447 = vstv %s446
        %v448 = vmul.f32 %v447, %v317
        %s449 = sld [smem:[#allocation6 + $0x3d]]
        %v450 = vstv %s449
        %v451 = vmul.f32 %v450, %v353
        %v452 = vadd.f32 %v448, %v451
        %s453 = sld [smem:[#allocation6 + $0x3e]]
        %v454 = vstv %s453
        %v455 = vmul.f32 %v454, %v389
        %v456 = vadd.f32 %v452, %v455
        %s457 = sld [smem:[#allocation6 + $0x3f]]
        %v458 = vstv %s457
        %v459 = vmul.f32 %v458, %v425
        %v460 = vadd.f32 %v456, %v459
        %s461 = sld [smem:[#allocation6 + $0x49]]
        %v462 = vstv %s461
        %v463 = vadd.f32 %v460, %v462
        %v464 = vmul.f32 %v463, 0.2
        %v465 = vmax.f32 %v463, %v464
        %s466 = sld [smem:[#allocation6 + $0x40]]
        %v467 = vstv %s466
        %v468 = vmul.f32 %v467, %v317
        %s469 = sld [smem:[#allocation6 + $0x41]]
        %v470 = vstv %s469
        %v471 = vmul.f32 %v470, %v353
        %v472 = vadd.f32 %v468, %v471
        %s473 = sld [smem:[#allocation6 + $0x42]]
        %v474 = vstv %s473
        %v475 = vmul.f32 %v474, %v389
        %v476 = vadd.f32 %v472, %v475
        %s477 = sld [smem:[#allocation6 + $0x43]]
        %v478 = vstv %s477
        %v479 = vmul.f32 %v478, %v425
        %v480 = vadd.f32 %v476, %v479
        %s481 = sld [smem:[#allocation6 + $0x4a]]
        %v482 = vstv %s481
        %v483 = vadd.f32 %v480, %v482
        %v484 = vmul.f32 %v483, 0.2
        %v485 = vmax.f32 %v483, %v484
        %s486 = sld [smem:[#allocation6 + $0x44]]
        %v487 = vstv %s486
        %v488 = vmul.f32 %v487, %v317
        %s489 = sld [smem:[#allocation6 + $0x45]]
        %v490 = vstv %s489
        %v491 = vmul.f32 %v490, %v353
        %v492 = vadd.f32 %v488, %v491
        %s493 = sld [smem:[#allocation6 + $0x46]]
        %v494 = vstv %s493
        %v495 = vmul.f32 %v494, %v389
        %v496 = vadd.f32 %v492, %v495
        %s497 = sld [smem:[#allocation6 + $0x47]]
        %v498 = vstv %s497
        %v499 = vmul.f32 %v498, %v425
        %v500 = vadd.f32 %v496, %v499
        %s501 = sld [smem:[#allocation6 + $0x4b]]
        %v502 = vstv %s501
        %v503 = vadd.f32 %v500, %v502
        %v504 = vmul.f32 %v503, 0.2
        %v505 = vmax.f32 %v503, %v504
        %s506 = sld [smem:[#allocation6 + $0x4c]]
        %v507 = vstv %s506
        %v508 = vmul.f32 %v507, %v195
        %s509 = sld [smem:[#allocation6 + $0x4d]]
        %v510 = vstv %s509
        %v511 = vmul.f32 %v510, %v197
        %v512 = vadd.f32 %v508, %v511
        %s513 = sld [smem:[#allocation6 + $0x4e]]
        %v514 = vstv %s513
        %v515 = vmul.f32 %v514, %v199
        %v516 = vadd.f32 %v512, %v515
        %s517 = sld [smem:[#allocation6 + $0x4f]]
        %v518 = vstv %s517
        %v519 = vmul.f32 %v518, %v201
        %v520 = vadd.f32 %v516, %v519
        %s521 = sld [smem:[#allocation6 + $0x50]]
        %v522 = vstv %s521
        %v523 = vmul.f32 %v522, %v221
        %v524 = vadd.f32 %v520, %v523
        %s525 = sld [smem:[#allocation6 + $0x51]]
        %v526 = vstv %s525
        %v527 = vmul.f32 %v526, %v241
        %v528 = vadd.f32 %v524, %v527
        %s529 = sld [smem:[#allocation6 + $0x52]]
        %v530 = vstv %s529
        %v531 = vmul.f32 %v530, %v261
        %v532 = vadd.f32 %v528, %v531
        %s533 = sld [smem:[#allocation6 + $0x53]]
        %v534 = vstv %s533
        %v535 = vmul.f32 %v534, %v281
        %v536 = vadd.f32 %v532, %v535
        %s537 = sld [smem:[#allocation6 + $0x54]]
        %v538 = vstv %s537
        %v539 = vmul.f32 %v538, %v445
        %v540 = vadd.f32 %v536, %v539
        %s541 = sld [smem:[#allocation6 + $0x55]]
        %v542 = vstv %s541
        %v543 = vmul.f32 %v542, %v465
        %v544 = vadd.f32 %v540, %v543
        %s545 = sld [smem:[#allocation6 + $0x56]]
        %v546 = vstv %s545
        %v547 = vmul.f32 %v546, %v485
        %v548 = vadd.f32 %v544, %v547
        %s549 = sld [smem:[#allocation6 + $0x57]]
        %v550 = vstv %s549
        %v551 = vmul.f32 %v550, %v505
        %v552 = vadd.f32 %v548, %v551
        %s553 = sld [smem:[#allocation6 + $0x7c]]
        %v554 = vstv %s553
        %v555 = vadd.f32 %v552, %v554
        %v556 = vmul.f32 %v555, 0.2
        %v557 = vmax.f32 %v555, %v556
        %s558 = sld [smem:[#allocation6 + $0x58]]
        %v559 = vstv %s558
        %v560 = vmul.f32 %v559, %v195
        %s561 = sld [smem:[#allocation6 + $0x59]]
        %v562 = vstv %s561
        %v563 = vmul.f32 %v562, %v197
        %v564 = vadd.f32 %v560, %v563
        %s565 = sld [smem:[#allocation6 + $0x5a]]
        %v566 = vstv %s565
        %v567 = vmul.f32 %v566, %v199
        %v568 = vadd.f32 %v564, %v567
        %s569 = sld [smem:[#allocation6 + $0x5b]]
        %v570 = vstv %s569
        %v571 = vmul.f32 %v570, %v201
        %v572 = vadd.f32 %v568, %v571
        %s573 = sld [smem:[#allocation6 + $0x5c]]
        %v574 = vstv %s573
        %v575 = vmul.f32 %v574, %v221
        %v576 = vadd.f32 %v572, %v575
        %s577 = sld [smem:[#allocation6 + $0x5d]]
        %v578 = vstv %s577
        %v579 = vmul.f32 %v578, %v241
        %v580 = vadd.f32 %v576, %v579
        %s581 = sld [smem:[#allocation6 + $0x5e]]
        %v582 = vstv %s581
        %v583 = vmul.f32 %v582, %v261
        %v584 = vadd.f32 %v580, %v583
        %s585 = sld [smem:[#allocation6 + $0x5f]]
        %v586 = vstv %s585
        %v587 = vmul.f32 %v586, %v281
        %v588 = vadd.f32 %v584, %v587
        %s589 = sld [smem:[#allocation6 + $0x60]]
        %v590 = vstv %s589
        %v591 = vmul.f32 %v590, %v445
        %v592 = vadd.f32 %v588, %v591
        %s593 = sld [smem:[#allocation6 + $0x61]]
        %v594 = vstv %s593
        %v595 = vmul.f32 %v594, %v465
        %v596 = vadd.f32 %v592, %v595
        %s597 = sld [smem:[#allocation6 + $0x62]]
        %v598 = vstv %s597
        %v599 = vmul.f32 %v598, %v485
        %v600 = vadd.f32 %v596, %v599
        %s601 = sld [smem:[#allocation6 + $0x63]]
        %v602 = vstv %s601
        %v603 = vmul.f32 %v602, %v505
        %v604 = vadd.f32 %v600, %v603
        %s605 = sld [smem:[#allocation6 + $0x7d]]
        %v606 = vstv %s605
        %v607 = vadd.f32 %v604, %v606
        %v608 = vmul.f32 %v607, 0.2
        %v609 = vmax.f32 %v607, %v608
        %s610 = sld [smem:[#allocation6 + $0x64]]
        %v611 = vstv %s610
        %v612 = vmul.f32 %v611, %v195
        %s613 = sld [smem:[#allocation6 + $0x65]]
        %v614 = vstv %s613
        %v615 = vmul.f32 %v614, %v197
        %v616 = vadd.f32 %v612, %v615
        %s617 = sld [smem:[#allocation6 + $0x66]]
        %v618 = vstv %s617
        %v619 = vmul.f32 %v618, %v199
        %v620 = vadd.f32 %v616, %v619
        %s621 = sld [smem:[#allocation6 + $0x67]]
        %v622 = vstv %s621
        %v623 = vmul.f32 %v622, %v201
        %v624 = vadd.f32 %v620, %v623
        %s625 = sld [smem:[#allocation6 + $0x68]]
        %v626 = vstv %s625
        %v627 = vmul.f32 %v626, %v221
        %v628 = vadd.f32 %v624, %v627
        %s629 = sld [smem:[#allocation6 + $0x69]]
        %v630 = vstv %s629
        %v631 = vmul.f32 %v630, %v241
        %v632 = vadd.f32 %v628, %v631
        %s633 = sld [smem:[#allocation6 + $0x6a]]
        %v634 = vstv %s633
        %v635 = vmul.f32 %v634, %v261
        %v636 = vadd.f32 %v632, %v635
        %s637 = sld [smem:[#allocation6 + $0x6b]]
        %v638 = vstv %s637
        %v639 = vmul.f32 %v638, %v281
        %v640 = vadd.f32 %v636, %v639
        %s641 = sld [smem:[#allocation6 + $0x6c]]
        %v642 = vstv %s641
        %v643 = vmul.f32 %v642, %v445
        %v644 = vadd.f32 %v640, %v643
        %s645 = sld [smem:[#allocation6 + $0x6d]]
        %v646 = vstv %s645
        %v647 = vmul.f32 %v646, %v465
        %v648 = vadd.f32 %v644, %v647
        %s649 = sld [smem:[#allocation6 + $0x6e]]
        %v650 = vstv %s649
        %v651 = vmul.f32 %v650, %v485
        %v652 = vadd.f32 %v648, %v651
        %s653 = sld [smem:[#allocation6 + $0x6f]]
        %v654 = vstv %s653
        %v655 = vmul.f32 %v654, %v505
        %v656 = vadd.f32 %v652, %v655
        %s657 = sld [smem:[#allocation6 + $0x7e]]
        %v658 = vstv %s657
        %v659 = vadd.f32 %v656, %v658
        %v660 = vmul.f32 %v659, 0.2
        %v661 = vmax.f32 %v659, %v660
        %s662 = sld [smem:[#allocation6 + $0x70]]
        %v663 = vstv %s662
        %v664 = vmul.f32 %v663, %v195
        %s665 = sld [smem:[#allocation6 + $0x71]]
        %v666 = vstv %s665
        %v667 = vmul.f32 %v666, %v197
        %v668 = vadd.f32 %v664, %v667
        %s669 = sld [smem:[#allocation6 + $0x72]]
        %v670 = vstv %s669
        %v671 = vmul.f32 %v670, %v199
        %v672 = vadd.f32 %v668, %v671
        %s673 = sld [smem:[#allocation6 + $0x73]]
        %v674 = vstv %s673
        %v675 = vmul.f32 %v674, %v201
        %v676 = vadd.f32 %v672, %v675
        %s677 = sld [smem:[#allocation6 + $0x74]]
        %v678 = vstv %s677
        %v679 = vmul.f32 %v678, %v221
        %v680 = vadd.f32 %v676, %v679
        %s681 = sld [smem:[#allocation6 + $0x75]]
        %v682 = vstv %s681
        %v683 = vmul.f32 %v682, %v241
        %v684 = vadd.f32 %v680, %v683
        %s685 = sld [smem:[#allocation6 + $0x76]]
        %v686 = vstv %s685
        %v687 = vmul.f32 %v686, %v261
        %v688 = vadd.f32 %v684, %v687
        %s689 = sld [smem:[#allocation6 + $0x77]]
        %v690 = vstv %s689
        %v691 = vmul.f32 %v690, %v281
        %v692 = vadd.f32 %v688, %v691
        %s693 = sld [smem:[#allocation6 + $0x78]]
        %v694 = vstv %s693
        %v695 = vmul.f32 %v694, %v445
        %v696 = vadd.f32 %v692, %v695
        %s697 = sld [smem:[#allocation6 + $0x79]]
        %v698 = vstv %s697
        %v699 = vmul.f32 %v698, %v465
        %v700 = vadd.f32 %v696, %v699
        %s701 = sld [smem:[#allocation6 + $0x7a]]
        %v702 = vstv %s701
        %v703 = vmul.f32 %v702, %v485
        %v704 = vadd.f32 %v700, %v703
        %s705 = sld [smem:[#allocation6 + $0x7b]]
        %v706 = vstv %s705
        %v707 = vmul.f32 %v706, %v505
        %v708 = vadd.f32 %v704, %v707
        %s709 = sld [smem:[#allocation6 + $0x7f]]
        %v710 = vstv %s709
        %v711 = vadd.f32 %v708, %v710
        %v712 = vmul.f32 %v711, 0.2
        %v713 = vmax.f32 %v711, %v712
        %s714 = sld [smem:[#allocation6 + $0x80]]
        %v715 = vstv %s714
        %v716 = vmul.f32 %v715, %v557
        %s717 = sld [smem:[#allocation6 + $0x81]]
        %v718 = vstv %s717
        %v719 = vmul.f32 %v718, %v609
        %v720 = vadd.f32 %v716, %v719
        %s721 = sld [smem:[#allocation6 + $0x82]]
        %v722 = vstv %s721
        %v723 = vmul.f32 %v722, %v661
        %v724 = vadd.f32 %v720, %v723
        %s725 = sld [smem:[#allocation6 + $0x83]]
        %v726 = vstv %s725
        %v727 = vmul.f32 %v726, %v713
        %v728 = vadd.f32 %v724, %v727
        %s729 = sld [smem:[#allocation6 + $0x90]]
        %v730 = vstv %s729
        %v731 = vadd.f32 %v728, %v730
        %v732 = vmul.f32 %v731, 0.2
        %v733 = vmax.f32 %v731, %v732
        %s734 = sld [smem:[#allocation6 + $0x84]]
        %v735 = vstv %s734
        %v736 = vmul.f32 %v735, %v557
        %s737 = sld [smem:[#allocation6 + $0x85]]
        %v738 = vstv %s737
        %v739 = vmul.f32 %v738, %v609
        %v740 = vadd.f32 %v736, %v739
        %s741 = sld [smem:[#allocation6 + $0x86]]
        %v742 = vstv %s741
        %v743 = vmul.f32 %v742, %v661
        %v744 = vadd.f32 %v740, %v743
        %s745 = sld [smem:[#allocation6 + $0x87]]
        %v746 = vstv %s745
        %v747 = vmul.f32 %v746, %v713
        %v748 = vadd.f32 %v744, %v747
        %s749 = sld [smem:[#allocation6 + $0x91]]
        %v750 = vstv %s749
        %v751 = vadd.f32 %v748, %v750
        %v752 = vmul.f32 %v751, 0.2
        %v753 = vmax.f32 %v751, %v752
        %s754 = sld [smem:[#allocation6 + $0x88]]
        %v755 = vstv %s754
        %v756 = vmul.f32 %v755, %v557
        %s757 = sld [smem:[#allocation6 + $0x89]]
        %v758 = vstv %s757
        %v759 = vmul.f32 %v758, %v609
        %v760 = vadd.f32 %v756, %v759
        %s761 = sld [smem:[#allocation6 + $0x8a]]
        %v762 = vstv %s761
        %v763 = vmul.f32 %v762, %v661
        %v764 = vadd.f32 %v760, %v763
        %s765 = sld [smem:[#allocation6 + $0x8b]]
        %v766 = vstv %s765
        %v767 = vmul.f32 %v766, %v713
        %v768 = vadd.f32 %v764, %v767
        %s769 = sld [smem:[#allocation6 + $0x92]]
        %v770 = vstv %s769
        %v771 = vadd.f32 %v768, %v770
        %v772 = vmul.f32 %v771, 0.2
        %v773 = vmax.f32 %v771, %v772
        %s774 = sld [smem:[#allocation6 + $0x8c]]
        %v775 = vstv %s774
        %v776 = vmul.f32 %v775, %v557
        %s777 = sld [smem:[#allocation6 + $0x8d]]
        %v778 = vstv %s777
        %v779 = vmul.f32 %v778, %v609
        %v780 = vadd.f32 %v776, %v779
        %s781 = sld [smem:[#allocation6 + $0x8e]]
        %v782 = vstv %s781
        %v783 = vmul.f32 %v782, %v661
        %v784 = vadd.f32 %v780, %v783
        %s785 = sld [smem:[#allocation6 + $0x8f]]
        %v786 = vstv %s785
        %v787 = vmul.f32 %v786, %v713
        %v788 = vadd.f32 %v784, %v787
        %s789 = sld [smem:[#allocation6 + $0x93]]
        %v790 = vstv %s789
        %v791 = vadd.f32 %v788, %v790
        %v792 = vmul.f32 %v791, 0.2
        %v793 = vmax.f32 %v791, %v792
        %s794 = sld [smem:[#allocation6 + $0x94]]
        %v795 = vstv %s794
        %v796 = vmul.f32 %v795, %v195
        %s797 = sld [smem:[#allocation6 + $0x95]]
        %v798 = vstv %s797
        %v799 = vmul.f32 %v798, %v197
        %v800 = vadd.f32 %v796, %v799
        %s801 = sld [smem:[#allocation6 + $0x96]]
        %v802 = vstv %s801
        %v803 = vmul.f32 %v802, %v199
        %v804 = vadd.f32 %v800, %v803
        %s805 = sld [smem:[#allocation6 + $0x97]]
        %v806 = vstv %s805
        %v807 = vmul.f32 %v806, %v201
        %v808 = vadd.f32 %v804, %v807
        %s809 = sld [smem:[#allocation6 + $0x98]]
        %v810 = vstv %s809
        %v811 = vmul.f32 %v810, %v221
        %v812 = vadd.f32 %v808, %v811
        %s813 = sld [smem:[#allocation6 + $0x99]]
        %v814 = vstv %s813
        %v815 = vmul.f32 %v814, %v241
        %v816 = vadd.f32 %v812, %v815
        %s817 = sld [smem:[#allocation6 + $0x9a]]
        %v818 = vstv %s817
        %v819 = vmul.f32 %v818, %v261
        %v820 = vadd.f32 %v816, %v819
        %s821 = sld [smem:[#allocation6 + $0x9b]]
        %v822 = vstv %s821
        %v823 = vmul.f32 %v822, %v281
        %v824 = vadd.f32 %v820, %v823
        %s825 = sld [smem:[#allocation6 + $0x9c]]
        %v826 = vstv %s825
        %v827 = vmul.f32 %v826, %v445
        %v828 = vadd.f32 %v824, %v827
        %s829 = sld [smem:[#allocation6 + $0x9d]]
        %v830 = vstv %s829
        %v831 = vmul.f32 %v830, %v465
        %v832 = vadd.f32 %v828, %v831
        %s833 = sld [smem:[#allocation6 + $0x9e]]
        %v834 = vstv %s833
        %v835 = vmul.f32 %v834, %v485
        %v836 = vadd.f32 %v832, %v835
        %s837 = sld [smem:[#allocation6 + $0x9f]]
        %v838 = vstv %s837
        %v839 = vmul.f32 %v838, %v505
        %v840 = vadd.f32 %v836, %v839
        %s841 = sld [smem:[#allocation6 + $0xa0]]
        %v842 = vstv %s841
        %v843 = vmul.f32 %v842, %v733
        %v844 = vadd.f32 %v840, %v843
        %s845 = sld [smem:[#allocation6 + $0xa1]]
        %v846 = vstv %s845
        %v847 = vmul.f32 %v846, %v753
        %v848 = vadd.f32 %v844, %v847
        %s849 = sld [smem:[#allocation6 + $0xa2]]
        %v850 = vstv %s849
        %v851 = vmul.f32 %v850, %v773
        %v852 = vadd.f32 %v848, %v851
        %s853 = sld [smem:[#allocation6 + $0xa3]]
        %v854 = vstv %s853
        %v855 = vmul.f32 %v854, %v793
        %v856 = vadd.f32 %v852, %v855
        %s857 = sld [smem:[#allocation6 + $0xd4]]
        %v858 = vstv %s857
        %v859 = vadd.f32 %v856, %v858
        %v860 = vmul.f32 %v859, 0.2
        %v861 = vmax.f32 %v859, %v860
        %s862 = sld [smem:[#allocation6 + $0xa4]]
        %v863 = vstv %s862
        %v864 = vmul.f32 %v863, %v195
        %s865 = sld [smem:[#allocation6 + $0xa5]]
        %v866 = vstv %s865
        %v867 = vmul.f32 %v866, %v197
        %v868 = vadd.f32 %v864, %v867
        %s869 = sld [smem:[#allocation6 + $0xa6]]
        %v870 = vstv %s869
        %v871 = vmul.f32 %v870, %v199
        %v872 = vadd.f32 %v868, %v871
        %s873 = sld [smem:[#allocation6 + $0xa7]]
        %v874 = vstv %s873
        %v875 = vmul.f32 %v874, %v201
        %v876 = vadd.f32 %v872, %v875
        %s877 = sld [smem:[#allocation6 + $0xa8]]
        %v878 = vstv %s877
        %v879 = vmul.f32 %v878, %v221
        %v880 = vadd.f32 %v876, %v879
        %s881 = sld [smem:[#allocation6 + $0xa9]]
        %v882 = vstv %s881
        %v883 = vmul.f32 %v882, %v241
        %v884 = vadd.f32 %v880, %v883
        %s885 = sld [smem:[#allocation6 + $0xaa]]
        %v886 = vstv %s885
        %v887 = vmul.f32 %v886, %v261
        %v888 = vadd.f32 %v884, %v887
        %s889 = sld [smem:[#allocation6 + $0xab]]
        %v890 = vstv %s889
        %v891 = vmul.f32 %v890, %v281
        %v892 = vadd.f32 %v888, %v891
        %s893 = sld [smem:[#allocation6 + $0xac]]
        %v894 = vstv %s893
        %v895 = vmul.f32 %v894, %v445
        %v896 = vadd.f32 %v892, %v895
        %s897 = sld [smem:[#allocation6 + $0xad]]
        %v898 = vstv %s897
        %v899 = vmul.f32 %v898, %v465
        %v900 = vadd.f32 %v896, %v899
        %s901 = sld [smem:[#allocation6 + $0xae]]
        %v902 = vstv %s901
        %v903 = vmul.f32 %v902, %v485
        %v904 = vadd.f32 %v900, %v903
        %s905 = sld [smem:[#allocation6 + $0xaf]]
        %v906 = vstv %s905
        %v907 = vmul.f32 %v906, %v505
        %v908 = vadd.f32 %v904, %v907
        %s909 = sld [smem:[#allocation6 + $0xb0]]
        %v910 = vstv %s909
        %v911 = vmul.f32 %v910, %v733
        %v912 = vadd.f32 %v908, %v911
        %s913 = sld [smem:[#allocation6 + $0xb1]]
        %v914 = vstv %s913
        %v915 = vmul.f32 %v914, %v753
        %v916 = vadd.f32 %v912, %v915
        %s917 = sld [smem:[#allocation6 + $0xb2]]
        %v918 = vstv %s917
        %v919 = vmul.f32 %v918, %v773
        %v920 = vadd.f32 %v916, %v919
        %s921 = sld [smem:[#allocation6 + $0xb3]]
        %v922 = vstv %s921
        %v923 = vmul.f32 %v922, %v793
        %v924 = vadd.f32 %v920, %v923
        %s925 = sld [smem:[#allocation6 + $0xd5]]
        %v926 = vstv %s925
        %v927 = vadd.f32 %v924, %v926
        %v928 = vmul.f32 %v927, 0.2
        %v929 = vmax.f32 %v927, %v928
        %s930 = sld [smem:[#allocation6 + $0xb4]]
        %v931 = vstv %s930
        %v932 = vmul.f32 %v931, %v195
        %s933 = sld [smem:[#allocation6 + $0xb5]]
        %v934 = vstv %s933
        %v935 = vmul.f32 %v934, %v197
        %v936 = vadd.f32 %v932, %v935
        %s937 = sld [smem:[#allocation6 + $0xb6]]
        %v938 = vstv %s937
        %v939 = vmul.f32 %v938, %v199
        %v940 = vadd.f32 %v936, %v939
        %s941 = sld [smem:[#allocation6 + $0xb7]]
        %v942 = vstv %s941
        %v943 = vmul.f32 %v942, %v201
        %v944 = vadd.f32 %v940, %v943
        %s945 = sld [smem:[#allocation6 + $0xb8]]
        %v946 = vstv %s945
        %v947 = vmul.f32 %v946, %v221
        %v948 = vadd.f32 %v944, %v947
        %s949 = sld [smem:[#allocation6 + $0xb9]]
        %v950 = vstv %s949
        %v951 = vmul.f32 %v950, %v241
        %v952 = vadd.f32 %v948, %v951
        %s953 = sld [smem:[#allocation6 + $0xba]]
        %v954 = vstv %s953
        %v955 = vmul.f32 %v954, %v261
        %v956 = vadd.f32 %v952, %v955
        %s957 = sld [smem:[#allocation6 + $0xbb]]
        %v958 = vstv %s957
        %v959 = vmul.f32 %v958, %v281
        %v960 = vadd.f32 %v956, %v959
        %s961 = sld [smem:[#allocation6 + $0xbc]]
        %v962 = vstv %s961
        %v963 = vmul.f32 %v962, %v445
        %v964 = vadd.f32 %v960, %v963
        %s965 = sld [smem:[#allocation6 + $0xbd]]
        %v966 = vstv %s965
        %v967 = vmul.f32 %v966, %v465
        %v968 = vadd.f32 %v964, %v967
        %s969 = sld [smem:[#allocation6 + $0xbe]]
        %v970 = vstv %s969
        %v971 = vmul.f32 %v970, %v485
        %v972 = vadd.f32 %v968, %v971
        %s973 = sld [smem:[#allocation6 + $0xbf]]
        %v974 = vstv %s973
        %v975 = vmul.f32 %v974, %v505
        %v976 = vadd.f32 %v972, %v975
        %s977 = sld [smem:[#allocation6 + $0xc0]]
        %v978 = vstv %s977
        %v979 = vmul.f32 %v978, %v733
        %v980 = vadd.f32 %v976, %v979
        %s981 = sld [smem:[#allocation6 + $0xc1]]
        %v982 = vstv %s981
        %v983 = vmul.f32 %v982, %v753
        %v984 = vadd.f32 %v980, %v983
        %s985 = sld [smem:[#allocation6 + $0xc2]]
        %v986 = vstv %s985
        %v987 = vmul.f32 %v986, %v773
        %v988 = vadd.f32 %v984, %v987
        %s989 = sld [smem:[#allocation6 + $0xc3]]
        %v990 = vstv %s989
        %v991 = vmul.f32 %v990, %v793
        %v992 = vadd.f32 %v988, %v991
        %s993 = sld [smem:[#allocation6 + $0xd6]]
        %v994 = vstv %s993
        %v995 = vadd.f32 %v992, %v994
        %v996 = vmul.f32 %v995, 0.2
        %v997 = vmax.f32 %v995, %v996
        %s998 = sld [smem:[#allocation6 + $0xc4]]
        %v999 = vstv %s998
        %v1000 = vmul.f32 %v999, %v195
        %s1001 = sld [smem:[#allocation6 + $0xc5]]
        %v1002 = vstv %s1001
        %v1003 = vmul.f32 %v1002, %v197
        %v1004 = vadd.f32 %v1000, %v1003
        %s1005 = sld [smem:[#allocation6 + $0xc6]]
        %v1006 = vstv %s1005
        %v1007 = vmul.f32 %v1006, %v199
        %v1008 = vadd.f32 %v1004, %v1007
        %s1009 = sld [smem:[#allocation6 + $0xc7]]
        %v1010 = vstv %s1009
        %v1011 = vmul.f32 %v1010, %v201
        %v1012 = vadd.f32 %v1008, %v1011
        %s1013 = sld [smem:[#allocation6 + $0xc8]]
        %v1014 = vstv %s1013
        %v1015 = vmul.f32 %v1014, %v221
        %v1016 = vadd.f32 %v1012, %v1015
        %s1017 = sld [smem:[#allocation6 + $0xc9]]
        %v1018 = vstv %s1017
        %v1019 = vmul.f32 %v1018, %v241
        %v1020 = vadd.f32 %v1016, %v1019
        %s1021 = sld [smem:[#allocation6 + $0xca]]
        %v1022 = vstv %s1021
        %v1023 = vmul.f32 %v1022, %v261
        %v1024 = vadd.f32 %v1020, %v1023
        %s1025 = sld [smem:[#allocation6 + $0xcb]]
        %v1026 = vstv %s1025
        %v1027 = vmul.f32 %v1026, %v281
        %v1028 = vadd.f32 %v1024, %v1027
        %s1029 = sld [smem:[#allocation6 + $0xcc]]
        %v1030 = vstv %s1029
        %v1031 = vmul.f32 %v1030, %v445
        %v1032 = vadd.f32 %v1028, %v1031
        %s1033 = sld [smem:[#allocation6 + $0xcd]]
        %v1034 = vstv %s1033
        %v1035 = vmul.f32 %v1034, %v465
        %v1036 = vadd.f32 %v1032, %v1035
        %s1037 = sld [smem:[#allocation6 + $0xce]]
        %v1038 = vstv %s1037
        %v1039 = vmul.f32 %v1038, %v485
        %v1040 = vadd.f32 %v1036, %v1039
        %s1041 = sld [smem:[#allocation6 + $0xcf]]
        %v1042 = vstv %s1041
        %v1043 = vmul.f32 %v1042, %v505
        %v1044 = vadd.f32 %v1040, %v1043
        %s1045 = sld [smem:[#allocation6 + $0xd0]]
        %v1046 = vstv %s1045
        %v1047 = vmul.f32 %v1046, %v733
        %v1048 = vadd.f32 %v1044, %v1047
        %s1049 = sld [smem:[#allocation6 + $0xd1]]
        %v1050 = vstv %s1049
        %v1051 = vmul.f32 %v1050, %v753
        %v1052 = vadd.f32 %v1048, %v1051
        %s1053 = sld [smem:[#allocation6 + $0xd2]]
        %v1054 = vstv %s1053
        %v1055 = vmul.f32 %v1054, %v773
        %v1056 = vadd.f32 %v1052, %v1055
        %s1057 = sld [smem:[#allocation6 + $0xd3]]
        %v1058 = vstv %s1057
        %v1059 = vmul.f32 %v1058, %v793
        %v1060 = vadd.f32 %v1056, %v1059
        %s1061 = sld [smem:[#allocation6 + $0xd7]]
        %v1062 = vstv %s1061
        %v1063 = vadd.f32 %v1060, %v1062
        %v1064 = vmul.f32 %v1063, 0.2
        %v1065 = vmax.f32 %v1063, %v1064
        %1066 = vst [vmem:[%s194] sm:$0x3] %v861
        %s1067 = scalar_lea.vmem %s194, 2 [#allocation7]
        %1068 = vst [vmem:[%s1067] sm:$0x3] %v929
        %s1069 = scalar_lea.vmem %s194, 4 [#allocation7]
        %1070 = vst [vmem:[%s1069] sm:$0x3] %v997
        %s1071 = scalar_lea.vmem %s194, 6 [#allocation7]
        %1072 = vst [vmem:[%s1071] sm:$0x3] %v1065
        %s1073 = sand.u32 %s91, 1
        %s1074 = scalar_lea.sflag [#allocation4], %s1073
        %s1075 = sand.u32 %s91, 1
        %s1076 = smul.addr %s1075, 8
        %s1077 = scalar_lea.vmem [#allocation7], %s1076
        // Predicated region
        $region37: #{tpu_custom_call.1} parent=27 // pred_check
          %p1078 = pneg %p101
        $region38: #{tpu_custom_call.1} parent=27 // pred_check_branch
          %1080 = sbr.rel (%p1078) target = $region40
        $region39: #{tpu_custom_call.1} parent=27 // pred_region
          %1082 = vsyncadd %s1074, 0
          %s1083 = smul.addr %s24, 4
          %s1084 = sadd.s32 %s25, %s1083
          %s1085 = smul.addr %s1084, 2
          %s1086 = scalar_lea.hbm %s2, %s1085
          %s1087 = sshll.u32 %s1077, 4
          %s1088 = int_to_ptr.vmem [resolvable:$true] %s1087
          %s1089 = sshll.u32 %s1086, 4
          %s1090 = int_to_ptr.hbm [resolvable:$true] %s1089
          %1095 = dma.vmem_to_hbm [thread:$0]  %s1088, 128, %s1090, %s1074, 32, 32, 2
        $region40: #{tpu_custom_call.1} parent=27 // pred_fallthru
          _
      $region28: #{tpu_custom_call.1} parent=5 // pred_fallthru
        _
      %p1096 = scmp.le.s32.totalorder 2, %s15
      // Predicated region
      $region41: #{tpu_custom_call.1} parent=5 // pred_check
        %p1097 = pneg %p1096
      $region42: #{tpu_custom_call.1} parent=5 // pred_check_branch
        %1099 = sbr.rel (%p1097) target = $region44
      $region43: #{tpu_custom_call.1} parent=5 // pred_region
        %s1100 = ssub.s32 %s15, 2
        // Predicated region
        $region45: #{tpu_custom_call.1} parent=43 // pred_check
          %p1101 = pneg %p107
        $region46: #{tpu_custom_call.1} parent=43 // pred_check_branch
          %1103 = sbr.rel (%p1101) target = $region48
        $region47: #{tpu_custom_call.1} parent=43 // pred_region
          %s1104 = sand.u32 %s92, 1
          %s1105 = scalar_lea.sflag [#allocation4], %s1104
          %s1106 = sand.u32 %s92, 1
          %s1107 = smul.addr %s1106, 8
          %s1108 = scalar_lea.vmem [#allocation7], %s1107
          %1110 = dma.done %s1105, 128
        $region48: #{tpu_custom_call.1} parent=43 // pred_fallthru
          _
      $region44: #{tpu_custom_call.1} parent=5 // pred_fallthru
        _
    $region6: #{tpu_custom_call.1} parent=1 // loop_footer
      %s19 = sadd.s32 1, %s15
    $region7: #{tpu_custom_call.1} parent=1 // loop_footer_branch
      %14 = sbr.rel target = $region3
    $region8: #{tpu_custom_call.1} parent=1 // loop_exit
      _
    %1111 = vsyncpa [#allocation3], 1
    %s1112 = scalar_lea.sflag [#allocation3], 1
    %1113 = vsyncpa %s1112, 1
    %1114 = vsyncpa [#allocation4], 1
    %s1115 = scalar_lea.sflag [#allocation4], 1
    %1116 = vsyncpa %s1115, 1
    %1117 = vsyncpa [#allocation5], 1
    %s1118 = scalar_lea.sflag [#allocation5], 1
    %1119 = vsyncpa %s1118, 1

</llo_original>
